<compile_context>
chip_gen: v7x
topology: tpu7x:2x2x1
jax: 0.10.0
libtpu: 0.0.40
codegen_flags: <defaults>
</compile_context>

<pallas_src>
import functools

import jax
import jax.numpy as jnp
from jax import lax
from jax.experimental import pallas as pl
from jax.experimental.pallas import tpu as pltpu


def _round_up(x, m):
    return (x + m - 1) // m * m


def _loss_kernel(*refs, n_stages, inv_paf_n, inv_hm_n, hw, hw_tile):
    """One grid step == one lane (H*W) tile; all stages unrolled in-kernel.

    Computes ((pred - target) * mask)^2, which is algebraically identical to
    the reference's (pred*mask - target*mask)^2 (only float-associativity-level
    differences).  Each stage's squared diff is reduced over rows into a
    (1, hw_tile) partial; the ragged last tile's padded lanes are dropped with
    a lane-validity select before the final cross-lane reduce.
    """
    paf_pred_refs = refs[:n_stages]
    hm_pred_refs = refs[n_stages:2 * n_stages]
    paf_t_ref, paf_m_ref, hm_t_ref, hm_m_ref = refs[2 * n_stages:2 * n_stages + 4]
    out_ref = refs[2 * n_stages + 4]

    # Lane-validity predicate: global lane index < hw.
    lane = lax.broadcasted_iota(jnp.int32, (1, hw_tile), 1)
    valid = (pl.program_id(0) * hw_tile + lane) < hw          # (1, hw_tile) bool

    paf_t = paf_t_ref[...].astype(jnp.float32)
    paf_m = paf_m_ref[...].astype(jnp.float32)
    hm_t = hm_t_ref[...].astype(jnp.float32)
    hm_m = hm_m_ref[...].astype(jnp.float32)

    paf_part = jnp.zeros((1, hw_tile), jnp.float32)
    hm_part = jnp.zeros((1, hw_tile), jnp.float32)
    for j in range(n_stages):                                  # unrolled stages
        d = (paf_pred_refs[j][...].astype(jnp.float32) - paf_t) * paf_m
        paf_part = paf_part + jnp.sum(d * d, axis=0, keepdims=True)
        d = (hm_pred_refs[j][...].astype(jnp.float32) - hm_t) * hm_m
        hm_part = hm_part + jnp.sum(d * d, axis=0, keepdims=True)

    # jnp.where (select), not multiply: padded lanes of the last tile hold
    # undefined data (possibly NaN/Inf) and must not contribute.
    paf_part = jnp.where(valid, paf_part, 0.0)
    hm_part = jnp.where(valid, hm_part, 0.0)

    partial = (jnp.sum(paf_part) * jnp.float32(inv_paf_n)
               + jnp.sum(hm_part) * jnp.float32(inv_hm_n))
    out_ref[...] = jnp.full(out_ref.shape, partial, dtype=out_ref.dtype)


def _pick_lane_tile(hw, resident_bytes_per_lane):
    """Pick the lane-axis tile size (multiple of 128), used with a ceil-div
    grid.  `resident_bytes_per_lane` must already include sublane padding and
    the x2 double-buffer factor."""
    hw_pad = _round_up(hw, 128)
    vmem_budget = 16 * 1024 * 1024   # fits default scoped VMEM on v5e/v6e/v7x
    max_by_vmem = max(128, (vmem_budget // resident_bytes_per_lane) // 128 * 128)
    tile = min(1024, hw_pad, max_by_vmem)
    # Require >= 4 grid steps (>= 2 per v7x TensorCore -> per-core pipelining)
    # as long as the tile stays >= 512 lanes (keeps per-step DMAs ~100-200 KB).
    while tile > 512 and pl.cdiv(hw, tile) < 4:
        tile -= 128
    return tile


def openpose_loss(saved_for_loss, heatmap_target, heatmap_mask,
                  paf_target, paf_mask):
    """Pallas implementation of OpenPoseLoss.forward.

    saved_for_loss: list of 2*n_stages arrays, alternating
        [paf_pred_0, hm_pred_0, paf_pred_1, hm_pred_1, ...], each NCHW.
    """
    B, C_paf, H, W = paf_target.shape
    _, C_hm, _, _ = heatmap_target.shape
    n_stages = len(saved_for_loss) // 2
    hw = H * W
    paf_rows = B * C_paf
    hm_rows = B * C_hm

    # Pure contiguous-dim merges -> no extra HBM copies of the prediction bytes.
    paf_preds = [saved_for_loss[2 * j].reshape(paf_rows, hw)
                 for j in range(n_stages)]
    hm_preds = [saved_for_loss[2 * j + 1].reshape(hm_rows, hw)
                for j in range(n_stages)]
    paf_t = paf_target.reshape(paf_rows, hw)
    paf_m = paf_mask.reshape(paf_rows, hw)
    hm_t = heatmap_target.reshape(hm_rows, hw)
    hm_m = heatmap_mask.reshape(hm_rows, hw)

    inv_paf_n = 1.0 / float(paf_rows * hw)   # mse 'mean' divisor (PAF branch)
    inv_hm_n = 1.0 / float(hm_rows * hw)     # mse 'mean' divisor (heatmap branch)

    # Honest per-lane resident footprint: sublane-padded row counts,
    # (n_stages preds + target + mask) per branch, f32 worst case, x2 buffers.
    paf_rows_pad = _round_up(paf_rows, 8)
    hm_rows_pad = _round_up(hm_rows, 8)
    resident_bytes_per_lane = 2 * 4 * (n_stages + 2) * (paf_rows_pad + hm_rows_pad)
    hw_tile = _pick_lane_tile(hw, resident_bytes_per_lane)
    n_tiles = pl.cdiv(hw, hw_tile)

    paf_spec = pl.BlockSpec((paf_rows, hw_tile), lambda i: (0, i))
    hm_spec = pl.BlockSpec((hm_rows, hw_tile), lambda i: (0, i))
    in_specs = ([paf_spec] * n_stages + [hm_spec] * n_stages
                + [paf_spec, paf_spec, hm_spec, hm_spec])

    kernel = functools.partial(_loss_kernel, n_stages=n_stages,
                               inv_paf_n=inv_paf_n, inv_hm_n=inv_hm_n,
                               hw=hw, hw_tile=hw_tile)

    all_inputs = paf_preds + hm_preds + [paf_t, paf_m, hm_t, hm_m]
    bytes_in = sum(int(x.size) * x.dtype.itemsize for x in all_inputs)
    cost = pl.CostEstimate(
        flops=4 * n_stages * (paf_rows + hm_rows) * hw,
        transcendentals=0,
        bytes_accessed=bytes_in + n_tiles * 8 * 128 * 4)

    partials = pl.pallas_call(
        kernel,
        out_shape=jax.ShapeDtypeStruct((n_tiles, 8, 128), jnp.float32),
        grid_spec=pltpu.PrefetchScalarGridSpec(
            num_scalar_prefetch=0,
            grid=(n_tiles,),
            in_specs=in_specs,
            out_specs=pl.BlockSpec((1, 8, 128), lambda i: (i, 0, 0)),
        ),
        compiler_params=pltpu.CompilerParams(
            dimension_semantics=("parallel",)),     # lane tiles are independent
        cost_estimate=cost,
    )(*all_inputs)

    # TODO(synk): row-chunked (8-16 row) inner fori_loop over the stage loop
    # would further cut in-kernel VMEM traffic; omitted (kernel is HBM-bound).
    return jnp.sum(partials[:, 0, 0])


def openpose_loss_ref(saved_for_loss, heatmap_target, heatmap_mask,
                      paf_target, paf_mask):
    """Pure-JAX reference mirroring the PyTorch forward."""
    n_stages = len(saved_for_loss) // 2
    total = jnp.float32(0.0)
    for j in range(n_stages):
        pred1 = saved_for_loss[2 * j] * paf_mask
        gt1 = paf_target.astype(jnp.float32) * paf_mask
        pred2 = saved_for_loss[2 * j + 1] * heatmap_mask
        gt2 = heatmap_target.astype(jnp.float32) * heatmap_mask
        total += jnp.mean((pred1 - gt1) ** 2) + jnp.mean((pred2 - gt2) ** 2)
    return total


def _make_inputs(key, B, C_paf, C_hm, H, W):
    keys = jax.random.split(key, 16)
    saved_for_loss = []
    for j in range(6):
        k_paf, k_hm = jax.random.split(keys[j], 2)
        saved_for_loss.append(
            jax.random.normal(k_paf, (B, C_paf, H, W), dtype=jnp.float32))
        saved_for_loss.append(
            jax.random.normal(k_hm, (B, C_hm, H, W), dtype=jnp.float32))
    heatmap_target = jax.random.normal(keys[6], (B, C_hm, H, W), jnp.float32)
    heatmap_mask = (jax.random.uniform(keys[7], (B, C_hm, H, W)) > 0.2
                    ).astype(jnp.float32)
    paf_target = jax.random.normal(keys[8], (B, C_paf, H, W), jnp.float32)
    paf_mask = (jax.random.uniform(keys[9], (B, C_paf, H, W)) > 0.2
                ).astype(jnp.float32)
    return saved_for_loss, heatmap_target, heatmap_mask, paf_target, paf_mask


if __name__ == "__main__":
    key = jax.random.PRNGKey(0)
    k_small, k_real = jax.random.split(key, 2)

    # Small shapes consistent with the module (lane count IS a 128 multiple).
    # And the real deployment shape 46x46 (hw=2116, ragged last tile path).
    configs = [
        (k_small, 2, 38, 19, 16, 16),
        (k_real, 2, 38, 19, 46, 46),
    ]
    for k, B, C_PAF, C_HM, H, W in configs:
        args = _make_inputs(k, B, C_PAF, C_HM, H, W)
        loss = jax.block_until_ready(openpose_loss(*args))
        ref = jax.block_until_ready(openpose_loss_ref(*args))
        assert jnp.allclose(loss, ref, rtol=1e-4, atol=1e-4), (H, W, loss, ref)

    print("KERNEL_OK")
</pallas_src>

<mosaic_0001>
module attributes {stable_mosaic.version = 11 : i64} {
  func.func @_loss_kernel(%arg0: i32, %arg1: memref<76x256xf32, #tpu.memory_space<vmem>>, %arg2: memref<76x256xf32, #tpu.memory_space<vmem>>, %arg3: memref<76x256xf32, #tpu.memory_space<vmem>>, %arg4: memref<76x256xf32, #tpu.memory_space<vmem>>, %arg5: memref<76x256xf32, #tpu.memory_space<vmem>>, %arg6: memref<76x256xf32, #tpu.memory_space<vmem>>, %arg7: memref<38x256xf32, #tpu.memory_space<vmem>>, %arg8: memref<38x256xf32, #tpu.memory_space<vmem>>, %arg9: memref<38x256xf32, #tpu.memory_space<vmem>>, %arg10: memref<38x256xf32, #tpu.memory_space<vmem>>, %arg11: memref<38x256xf32, #tpu.memory_space<vmem>>, %arg12: memref<38x256xf32, #tpu.memory_space<vmem>>, %arg13: memref<76x256xf32, #tpu.memory_space<vmem>>, %arg14: memref<76x256xf32, #tpu.memory_space<vmem>>, %arg15: memref<38x256xf32, #tpu.memory_space<vmem>>, %arg16: memref<38x256xf32, #tpu.memory_space<vmem>>, %arg17: memref<1x8x128xf32, #tpu.memory_space<vmem>>) attributes {dimension_semantics = [#tpu.dimension_semantics<parallel>], iteration_bounds = array<i64: 1>, scalar_prefetch = 0 : i64, scratch_operands = 0 : i64, tpu.core_type = #tpu.core_type<tc>, window_params = [{transform_indices = @transform_0, window_bounds = array<i64: 76, 256>}, {transform_indices = @transform_1, window_bounds = array<i64: 76, 256>}, {transform_indices = @transform_2, window_bounds = array<i64: 76, 256>}, {transform_indices = @transform_3, window_bounds = array<i64: 76, 256>}, {transform_indices = @transform_4, window_bounds = array<i64: 76, 256>}, {transform_indices = @transform_5, window_bounds = array<i64: 76, 256>}, {transform_indices = @transform_6, window_bounds = array<i64: 38, 256>}, {transform_indices = @transform_7, window_bounds = array<i64: 38, 256>}, {transform_indices = @transform_8, window_bounds = array<i64: 38, 256>}, {transform_indices = @transform_9, window_bounds = array<i64: 38, 256>}, {transform_indices = @transform_10, window_bounds = array<i64: 38, 256>}, {transform_indices = @transform_11, window_bounds = array<i64: 38, 256>}, {transform_indices = @transform_12, window_bounds = array<i64: 76, 256>}, {transform_indices = @transform_13, window_bounds = array<i64: 76, 256>}, {transform_indices = @transform_14, window_bounds = array<i64: 38, 256>}, {transform_indices = @transform_15, window_bounds = array<i64: 38, 256>}, {transform_indices = @transform_16, window_bounds = array<i64: 1, 8, 128>}]} {
    %0 = tpu.iota {dimensions = array<i32: 1>} : vector<1x256xi32>
    %c256_i32 = arith.constant 256 : i32
    %1 = arith.muli %arg0, %c256_i32 : i32
    %2 = vector.broadcast %1 : i32 to vector<1x256xi32>
    %3 = arith.addi %2, %0 : vector<1x256xi32>
    %c256_i32_0 = arith.constant 256 : i32
    %4 = vector.broadcast %c256_i32_0 : i32 to vector<1x256xi32>
    %5 = arith.cmpi slt, %3, %4 : vector<1x256xi32>
    %c0 = arith.constant 0 : index
    %c0_1 = arith.constant 0 : index
    %6 = vector.load %arg13[%c0, %c0_1] : memref<76x256xf32, #tpu.memory_space<vmem>>, vector<76x256xf32>
    %c0_2 = arith.constant 0 : index
    %c0_3 = arith.constant 0 : index
    %7 = vector.load %arg14[%c0_2, %c0_3] : memref<76x256xf32, #tpu.memory_space<vmem>>, vector<76x256xf32>
    %c0_4 = arith.constant 0 : index
    %c0_5 = arith.constant 0 : index
    %8 = vector.load %arg15[%c0_4, %c0_5] : memref<38x256xf32, #tpu.memory_space<vmem>>, vector<38x256xf32>
    %c0_6 = arith.constant 0 : index
    %c0_7 = arith.constant 0 : index
    %9 = vector.load %arg16[%c0_6, %c0_7] : memref<38x256xf32, #tpu.memory_space<vmem>>, vector<38x256xf32>
    %cst = arith.constant 0.000000e+00 : f32
    %10 = vector.broadcast %cst : f32 to vector<1x256xf32>
    %cst_8 = arith.constant 0.000000e+00 : f32
    %11 = vector.broadcast %cst_8 : f32 to vector<1x256xf32>
    %c0_9 = arith.constant 0 : index
    %c0_10 = arith.constant 0 : index
    %12 = vector.load %arg1[%c0_9, %c0_10] : memref<76x256xf32, #tpu.memory_space<vmem>>, vector<76x256xf32>
    %13 = arith.subf %12, %6 : vector<76x256xf32>
    %14 = arith.mulf %13, %7 : vector<76x256xf32>
    %15 = arith.mulf %14, %14 : vector<76x256xf32>
    %cst_11 = arith.constant dense<0.000000e+00> : vector<256xf32>
    %16 = vector.multi_reduction <add>, %15, %cst_11 [0] : vector<76x256xf32> to vector<256xf32>
    %17 = vector.shape_cast %16 : vector<256xf32> to vector<1x256xf32>
    %18 = arith.addf %10, %17 : vector<1x256xf32>
    %c0_12 = arith.constant 0 : index
    %c0_13 = arith.constant 0 : index
    %19 = vector.load %arg7[%c0_12, %c0_13] : memref<38x256xf32, #tpu.memory_space<vmem>>, vector<38x256xf32>
    %20 = arith.subf %19, %8 : vector<38x256xf32>
    %21 = arith.mulf %20, %9 : vector<38x256xf32>
    %22 = arith.mulf %21, %21 : vector<38x256xf32>
    %cst_14 = arith.constant dense<0.000000e+00> : vector<256xf32>
    %23 = vector.multi_reduction <add>, %22, %cst_14 [0] : vector<38x256xf32> to vector<256xf32>
    %24 = vector.shape_cast %23 : vector<256xf32> to vector<1x256xf32>
    %25 = arith.addf %11, %24 : vector<1x256xf32>
    %c0_15 = arith.constant 0 : index
    %c0_16 = arith.constant 0 : index
    %26 = vector.load %arg2[%c0_15, %c0_16] : memref<76x256xf32, #tpu.memory_space<vmem>>, vector<76x256xf32>
    %27 = arith.subf %26, %6 : vector<76x256xf32>
    %28 = arith.mulf %27, %7 : vector<76x256xf32>
    %29 = arith.mulf %28, %28 : vector<76x256xf32>
    %cst_17 = arith.constant dense<0.000000e+00> : vector<256xf32>
    %30 = vector.multi_reduction <add>, %29, %cst_17 [0] : vector<76x256xf32> to vector<256xf32>
    %31 = vector.shape_cast %30 : vector<256xf32> to vector<1x256xf32>
    %32 = arith.addf %18, %31 : vector<1x256xf32>
    %c0_18 = arith.constant 0 : index
    %c0_19 = arith.constant 0 : index
    %33 = vector.load %arg8[%c0_18, %c0_19] : memref<38x256xf32, #tpu.memory_space<vmem>>, vector<38x256xf32>
    %34 = arith.subf %33, %8 : vector<38x256xf32>
    %35 = arith.mulf %34, %9 : vector<38x256xf32>
    %36 = arith.mulf %35, %35 : vector<38x256xf32>
    %cst_20 = arith.constant dense<0.000000e+00> : vector<256xf32>
    %37 = vector.multi_reduction <add>, %36, %cst_20 [0] : vector<38x256xf32> to vector<256xf32>
    %38 = vector.shape_cast %37 : vector<256xf32> to vector<1x256xf32>
    %39 = arith.addf %25, %38 : vector<1x256xf32>
    %c0_21 = arith.constant 0 : index
    %c0_22 = arith.constant 0 : index
    %40 = vector.load %arg3[%c0_21, %c0_22] : memref<76x256xf32, #tpu.memory_space<vmem>>, vector<76x256xf32>
    %41 = arith.subf %40, %6 : vector<76x256xf32>
    %42 = arith.mulf %41, %7 : vector<76x256xf32>
    %43 = arith.mulf %42, %42 : vector<76x256xf32>
    %cst_23 = arith.constant dense<0.000000e+00> : vector<256xf32>
    %44 = vector.multi_reduction <add>, %43, %cst_23 [0] : vector<76x256xf32> to vector<256xf32>
    %45 = vector.shape_cast %44 : vector<256xf32> to vector<1x256xf32>
    %46 = arith.addf %32, %45 : vector<1x256xf32>
    %c0_24 = arith.constant 0 : index
    %c0_25 = arith.constant 0 : index
    %47 = vector.load %arg9[%c0_24, %c0_25] : memref<38x256xf32, #tpu.memory_space<vmem>>, vector<38x256xf32>
    %48 = arith.subf %47, %8 : vector<38x256xf32>
    %49 = arith.mulf %48, %9 : vector<38x256xf32>
    %50 = arith.mulf %49, %49 : vector<38x256xf32>
    %cst_26 = arith.constant dense<0.000000e+00> : vector<256xf32>
    %51 = vector.multi_reduction <add>, %50, %cst_26 [0] : vector<38x256xf32> to vector<256xf32>
    %52 = vector.shape_cast %51 : vector<256xf32> to vector<1x256xf32>
    %53 = arith.addf %39, %52 : vector<1x256xf32>
    %c0_27 = arith.constant 0 : index
    %c0_28 = arith.constant 0 : index
    %54 = vector.load %arg4[%c0_27, %c0_28] : memref<76x256xf32, #tpu.memory_space<vmem>>, vector<76x256xf32>
    %55 = arith.subf %54, %6 : vector<76x256xf32>
    %56 = arith.mulf %55, %7 : vector<76x256xf32>
    %57 = arith.mulf %56, %56 : vector<76x256xf32>
    %cst_29 = arith.constant dense<0.000000e+00> : vector<256xf32>
    %58 = vector.multi_reduction <add>, %57, %cst_29 [0] : vector<76x256xf32> to vector<256xf32>
    %59 = vector.shape_cast %58 : vector<256xf32> to vector<1x256xf32>
    %60 = arith.addf %46, %59 : vector<1x256xf32>
    %c0_30 = arith.constant 0 : index
    %c0_31 = arith.constant 0 : index
    %61 = vector.load %arg10[%c0_30, %c0_31] : memref<38x256xf32, #tpu.memory_space<vmem>>, vector<38x256xf32>
    %62 = arith.subf %61, %8 : vector<38x256xf32>
    %63 = arith.mulf %62, %9 : vector<38x256xf32>
    %64 = arith.mulf %63, %63 : vector<38x256xf32>
    %cst_32 = arith.constant dense<0.000000e+00> : vector<256xf32>
    %65 = vector.multi_reduction <add>, %64, %cst_32 [0] : vector<38x256xf32> to vector<256xf32>
    %66 = vector.shape_cast %65 : vector<256xf32> to vector<1x256xf32>
    %67 = arith.addf %53, %66 : vector<1x256xf32>
    %c0_33 = arith.constant 0 : index
    %c0_34 = arith.constant 0 : index
    %68 = vector.load %arg5[%c0_33, %c0_34] : memref<76x256xf32, #tpu.memory_space<vmem>>, vector<76x256xf32>
    %69 = arith.subf %68, %6 : vector<76x256xf32>
    %70 = arith.mulf %69, %7 : vector<76x256xf32>
    %71 = arith.mulf %70, %70 : vector<76x256xf32>
    %cst_35 = arith.constant dense<0.000000e+00> : vector<256xf32>
    %72 = vector.multi_reduction <add>, %71, %cst_35 [0] : vector<76x256xf32> to vector<256xf32>
    %73 = vector.shape_cast %72 : vector<256xf32> to vector<1x256xf32>
    %74 = arith.addf %60, %73 : vector<1x256xf32>
    %c0_36 = arith.constant 0 : index
    %c0_37 = arith.constant 0 : index
    %75 = vector.load %arg11[%c0_36, %c0_37] : memref<38x256xf32, #tpu.memory_space<vmem>>, vector<38x256xf32>
    %76 = arith.subf %75, %8 : vector<38x256xf32>
    %77 = arith.mulf %76, %9 : vector<38x256xf32>
    %78 = arith.mulf %77, %77 : vector<38x256xf32>
    %cst_38 = arith.constant dense<0.000000e+00> : vector<256xf32>
    %79 = vector.multi_reduction <add>, %78, %cst_38 [0] : vector<38x256xf32> to vector<256xf32>
    %80 = vector.shape_cast %79 : vector<256xf32> to vector<1x256xf32>
    %81 = arith.addf %67, %80 : vector<1x256xf32>
    %c0_39 = arith.constant 0 : index
    %c0_40 = arith.constant 0 : index
    %82 = vector.load %arg6[%c0_39, %c0_40] : memref<76x256xf32, #tpu.memory_space<vmem>>, vector<76x256xf32>
    %83 = arith.subf %82, %6 : vector<76x256xf32>
    %84 = arith.mulf %83, %7 : vector<76x256xf32>
    %85 = arith.mulf %84, %84 : vector<76x256xf32>
    %cst_41 = arith.constant dense<0.000000e+00> : vector<256xf32>
    %86 = vector.multi_reduction <add>, %85, %cst_41 [0] : vector<76x256xf32> to vector<256xf32>
    %87 = vector.shape_cast %86 : vector<256xf32> to vector<1x256xf32>
    %88 = arith.addf %74, %87 : vector<1x256xf32>
    %c0_42 = arith.constant 0 : index
    %c0_43 = arith.constant 0 : index
    %89 = vector.load %arg12[%c0_42, %c0_43] : memref<38x256xf32, #tpu.memory_space<vmem>>, vector<38x256xf32>
    %90 = arith.subf %89, %8 : vector<38x256xf32>
    %91 = arith.mulf %90, %9 : vector<38x256xf32>
    %92 = arith.mulf %91, %91 : vector<38x256xf32>
    %cst_44 = arith.constant dense<0.000000e+00> : vector<256xf32>
    %93 = vector.multi_reduction <add>, %92, %cst_44 [0] : vector<38x256xf32> to vector<256xf32>
    %94 = vector.shape_cast %93 : vector<256xf32> to vector<1x256xf32>
    %95 = arith.addf %81, %94 : vector<1x256xf32>
    %cst_45 = arith.constant 0.000000e+00 : f32
    %96 = vector.broadcast %cst_45 : f32 to vector<1x256xf32>
    %97 = arith.select %5, %88, %96 : vector<1x256xi1>, vector<1x256xf32>
    %cst_46 = arith.constant 0.000000e+00 : f32
    %98 = vector.broadcast %cst_46 : f32 to vector<1x256xf32>
    %99 = arith.select %5, %95, %98 : vector<1x256xi1>, vector<1x256xf32>
    %100 = vector.shape_cast %97 : vector<1x256xf32> to vector<1x1x256xf32>
    %cst_47 = arith.constant dense<0.000000e+00> : vector<1xf32>
    %101 = vector.multi_reduction <add>, %100, %cst_47 [1, 2] : vector<1x1x256xf32> to vector<1xf32>
    %102 = vector.shape_cast %101 : vector<1xf32> to vector<1x1x1xf32>
    %103 = vector.extract %102[0, 0, 0] : f32 from vector<1x1x1xf32>
    %cst_48 = arith.constant 5.13980267E-5 : f32
    %104 = arith.mulf %103, %cst_48 : f32
    %105 = vector.shape_cast %99 : vector<1x256xf32> to vector<1x1x256xf32>
    %cst_49 = arith.constant dense<0.000000e+00> : vector<1xf32>
    %106 = vector.multi_reduction <add>, %105, %cst_49 [1, 2] : vector<1x1x256xf32> to vector<1xf32>
    %107 = vector.shape_cast %106 : vector<1xf32> to vector<1x1x1xf32>
    %108 = vector.extract %107[0, 0, 0] : f32 from vector<1x1x1xf32>
    %cst_50 = arith.constant 1.02796053E-4 : f32
    %109 = arith.mulf %108, %cst_50 : f32
    %110 = arith.addf %104, %109 : f32
    %111 = vector.broadcast %110 : f32 to vector<1x8x128xf32>
    %c0_51 = arith.constant 0 : index
    %c0_52 = arith.constant 0 : index
    %c0_53 = arith.constant 0 : index
    %112 = vector.load %arg17[%c0_51, %c0_52, %c0_53] : memref<1x8x128xf32, #tpu.memory_space<vmem>>, vector<1x8x128xf32>
    tpu.vector_store %arg17[%c0_51, %c0_52, %c0_53], %111 {strides = array<i32>} : memref<1x8x128xf32, #tpu.memory_space<vmem>>, vector<1x8x128xf32>,
    return
  }
  func.func @transform_0(%arg0: i32) -> (i32, i32) {
    %c0_i32 = arith.constant 0 : i32
    %c0_i32_0 = arith.constant 0 : i32
    return %c0_i32, %arg0 : i32, i32
  }
  func.func @transform_1(%arg0: i32) -> (i32, i32) {
    %c0_i32 = arith.constant 0 : i32
    %c0_i32_0 = arith.constant 0 : i32
    return %c0_i32, %arg0 : i32, i32
  }
  func.func @transform_2(%arg0: i32) -> (i32, i32) {
    %c0_i32 = arith.constant 0 : i32
    %c0_i32_0 = arith.constant 0 : i32
    return %c0_i32, %arg0 : i32, i32
  }
  func.func @transform_3(%arg0: i32) -> (i32, i32) {
    %c0_i32 = arith.constant 0 : i32
    %c0_i32_0 = arith.constant 0 : i32
    return %c0_i32, %arg0 : i32, i32
  }
  func.func @transform_4(%arg0: i32) -> (i32, i32) {
    %c0_i32 = arith.constant 0 : i32
    %c0_i32_0 = arith.constant 0 : i32
    return %c0_i32, %arg0 : i32, i32
  }
  func.func @transform_5(%arg0: i32) -> (i32, i32) {
    %c0_i32 = arith.constant 0 : i32
    %c0_i32_0 = arith.constant 0 : i32
    return %c0_i32, %arg0 : i32, i32
  }
  func.func @transform_6(%arg0: i32) -> (i32, i32) {
    %c0_i32 = arith.constant 0 : i32
    %c0_i32_0 = arith.constant 0 : i32
    return %c0_i32, %arg0 : i32, i32
  }
  func.func @transform_7(%arg0: i32) -> (i32, i32) {
    %c0_i32 = arith.constant 0 : i32
    %c0_i32_0 = arith.constant 0 : i32
    return %c0_i32, %arg0 : i32, i32
  }
  func.func @transform_8(%arg0: i32) -> (i32, i32) {
    %c0_i32 = arith.constant 0 : i32
    %c0_i32_0 = arith.constant 0 : i32
    return %c0_i32, %arg0 : i32, i32
  }
  func.func @transform_9(%arg0: i32) -> (i32, i32) {
    %c0_i32 = arith.constant 0 : i32
    %c0_i32_0 = arith.constant 0 : i32
    return %c0_i32, %arg0 : i32, i32
  }
  func.func @transform_10(%arg0: i32) -> (i32, i32) {
    %c0_i32 = arith.constant 0 : i32
    %c0_i32_0 = arith.constant 0 : i32
    return %c0_i32, %arg0 : i32, i32
  }
  func.func @transform_11(%arg0: i32) -> (i32, i32) {
    %c0_i32 = arith.constant 0 : i32
    %c0_i32_0 = arith.constant 0 : i32
    return %c0_i32, %arg0 : i32, i32
  }
  func.func @transform_12(%arg0: i32) -> (i32, i32) {
    %c0_i32 = arith.constant 0 : i32
    %c0_i32_0 = arith.constant 0 : i32
    return %c0_i32, %arg0 : i32, i32
  }
  func.func @transform_13(%arg0: i32) -> (i32, i32) {
    %c0_i32 = arith.constant 0 : i32
    %c0_i32_0 = arith.constant 0 : i32
    return %c0_i32, %arg0 : i32, i32
  }
  func.func @transform_14(%arg0: i32) -> (i32, i32) {
    %c0_i32 = arith.constant 0 : i32
    %c0_i32_0 = arith.constant 0 : i32
    return %c0_i32, %arg0 : i32, i32
  }
  func.func @transform_15(%arg0: i32) -> (i32, i32) {
    %c0_i32 = arith.constant 0 : i32
    %c0_i32_0 = arith.constant 0 : i32
    return %c0_i32, %arg0 : i32, i32
  }
  func.func @transform_16(%arg0: i32) -> (i32, i32, i32) {
    %c0_i32 = arith.constant 0 : i32
    %c0_i32_0 = arith.constant 0 : i32
    %c0_i32_1 = arith.constant 0 : i32
    return %arg0, %c0_i32, %c0_i32_0 : i32, i32, i32
  }
}

</mosaic_0001>

<llo_original>
// kernel: tpu_custom_call.1
$region0: #{tpu_custom_call.1}
  #allocation0 [shape = 'u32[]', space=smem, size = 0x4, offset = 0x4, fixed_abs, tag = 'smem constant byte address 0x4 - core index']
  #allocation1 [shape = 'u32[144,128]{1,0:T(1,128)}', space=vmem, size = 0x12000, scoped, tag = 'internal scratch']
  %s0 = inlined_call_operand.hbm [shape: f32[76,256], index: 0, kind: input, shape index: {}]
  %s1 = inlined_call_operand.hbm [shape: f32[76,256], index: 1, kind: input, shape index: {}]
  %s2 = inlined_call_operand.hbm [shape: f32[76,256], index: 2, kind: input, shape index: {}]
  %s3 = inlined_call_operand.hbm [shape: f32[76,256], index: 3, kind: input, shape index: {}]
  %s4 = inlined_call_operand.hbm [shape: f32[76,256], index: 4, kind: input, shape index: {}]
  %s5 = inlined_call_operand.hbm [shape: f32[76,256], index: 5, kind: input, shape index: {}]
  %s6 = inlined_call_operand.hbm [shape: f32[38,256], index: 6, kind: input, shape index: {}]
  %s7 = inlined_call_operand.hbm [shape: f32[38,256], index: 7, kind: input, shape index: {}]
  %s8 = inlined_call_operand.hbm [shape: f32[38,256], index: 8, kind: input, shape index: {}]
  %s9 = inlined_call_operand.hbm [shape: f32[38,256], index: 9, kind: input, shape index: {}]
  %s10 = inlined_call_operand.hbm [shape: f32[38,256], index: 10, kind: input, shape index: {}]
  %s11 = inlined_call_operand.hbm [shape: f32[38,256], index: 11, kind: input, shape index: {}]
  %s12 = inlined_call_operand.hbm [shape: f32[76,256], index: 12, kind: input, shape index: {}]
  %s13 = inlined_call_operand.hbm [shape: f32[76,256], index: 13, kind: input, shape index: {}]
  %s14 = inlined_call_operand.hbm [shape: f32[38,256], index: 14, kind: input, shape index: {}]
  %s15 = inlined_call_operand.hbm [shape: f32[38,256], index: 15, kind: input, shape index: {}]
  %s16 = inlined_call_operand.hbm [shape: f32[1,8,128], index: 16, kind: output, shape index: {}]
  %s17 = sld [smem:[#allocation0]]
  $region138: #{tpu_custom_call.1} parent=0
    _
  %s19 = ssub.s32 1, %s17
  %s20 = scalar_select 0, %s19, %s17
  $region1: #{tpu_custom_call.1} parent=0
    #allocation2 [shape = 'u8[81920]{0}', space=vmem, size = 0x14000, scoped, tag = 'input window, operand 0, single buffered']
    #allocation3 [shape = 's32[1]{0}', space=sflag, size = 0x4, scoped, tag = 'scoped memory for tpu_custom_call.1']
    #allocation4 [shape = 's32[1]{0}', space=sflag, size = 0x4, scoped, tag = 'scoped memory for tpu_custom_call.1']
    #allocation5 [shape = 'u8[81920]{0}', space=vmem, size = 0x14000, scoped, tag = 'input window, operand 1, single buffered']
    #allocation6 [shape = 's32[1]{0}', space=sflag, size = 0x4, scoped, tag = 'scoped memory for tpu_custom_call.1']
    #allocation7 [shape = 'u8[81920]{0}', space=vmem, size = 0x14000, scoped, tag = 'input window, operand 2, single buffered']
    #allocation8 [shape = 'u8[81920]{0}', space=vmem, size = 0x14000, scoped, tag = 'input window, operand 3, single buffered']
    #allocation9 [shape = 's32[1]{0}', space=sflag, size = 0x4, scoped, tag = 'scoped memory for tpu_custom_call.1']
    #allocation10 [shape = 'u8[81920]{0}', space=vmem, size = 0x14000, scoped, tag = 'input window, operand 4, single buffered']
    #allocation11 [shape = 'u8[81920]{0}', space=vmem, size = 0x14000, scoped, tag = 'input window, operand 5, single buffered']
    #allocation12 [shape = 's32[1]{0}', space=sflag, size = 0x4, scoped, tag = 'scoped memory for tpu_custom_call.1']
    #allocation13 [shape = 'u8[40960]{0}', space=vmem, size = 0xa000, scoped, tag = 'input window, operand 6, single buffered']
    #allocation14 [shape = 'u8[40960]{0}', space=vmem, size = 0xa000, scoped, tag = 'input window, operand 7, single buffered']
    #allocation15 [shape = 's32[1]{0}', space=sflag, size = 0x4, scoped, tag = 'scoped memory for tpu_custom_call.1']
    #allocation16 [shape = 'u8[40960]{0}', space=vmem, size = 0xa000, scoped, tag = 'input window, operand 8, single buffered']
    #allocation17 [shape = 'u8[40960]{0}', space=vmem, size = 0xa000, scoped, tag = 'input window, operand 9, single buffered']
    #allocation18 [shape = 's32[1]{0}', space=sflag, size = 0x4, scoped, tag = 'scoped memory for tpu_custom_call.1']
    #allocation19 [shape = 'u8[40960]{0}', space=vmem, size = 0xa000, scoped, tag = 'input window, operand 10, single buffered']
    #allocation20 [shape = 'u8[40960]{0}', space=vmem, size = 0xa000, scoped, tag = 'input window, operand 11, single buffered']
    #allocation21 [shape = 's32[1]{0}', space=sflag, size = 0x4, scoped, tag = 'scoped memory for tpu_custom_call.1']
    #allocation22 [shape = 'u8[81920]{0}', space=vmem, size = 0x14000, scoped, tag = 'input window, operand 12, single buffered']
    #allocation23 [shape = 'u8[81920]{0}', space=vmem, size = 0x14000, scoped, tag = 'input window, operand 13, single buffered']
    #allocation24 [shape = 's32[1]{0}', space=sflag, size = 0x4, scoped, tag = 'scoped memory for tpu_custom_call.1']
    #allocation25 [shape = 'u8[40960]{0}', space=vmem, size = 0xa000, scoped, tag = 'input window, operand 14, single buffered']
    #allocation26 [shape = 'u8[40960]{0}', space=vmem, size = 0xa000, scoped, tag = 'input window, operand 15, single buffered']
    #allocation27 [shape = 's32[1]{0}', space=sflag, size = 0x4, scoped, tag = 'scoped memory for tpu_custom_call.1']
    #allocation28 [shape = 'u8[4096]{0}', space=vmem, size = 0x1000, scoped, tag = 'output window, operand 0, single buffered']
    %21 = vsyncpa [#allocation3], 0
    %22 = vsyncpa [#allocation6], 0
    %23 = vsyncpa [#allocation9], 0
    %24 = vsyncpa [#allocation12], 0
    %25 = vsyncpa [#allocation15], 0
    %26 = vsyncpa [#allocation18], 0
    %27 = vsyncpa [#allocation21], 0
    %28 = vsyncpa [#allocation24], 0
    %29 = vsyncpa [#allocation27], 0
    %30 = vsyncpa [#allocation4], 0
    // Predicated region
    $region2: #{tpu_custom_call.1} parent=1 // pred_check
      _
    $region3: #{tpu_custom_call.1} parent=1 // pred_check_branch
      %32 = sbr.rel (0) target = $region5
    $region4: #{tpu_custom_call.1} parent=1 // pred_region
      %s34 = ssub.s32 2560, 2560
      %35 = vsyncadd [#allocation3], %s34
      %s36 = sshll.u32 [#allocation2], 4
      %s37 = int_to_ptr.vmem [resolvable:$true] %s36
      %42 = dma.hbm_to_vmem [thread:$0]  %s0, 2560, %s37, [#allocation3], 256, 256, 16
    $region5: #{tpu_custom_call.1} parent=1 // pred_fallthru
      _
    // Predicated region
    $region6: #{tpu_custom_call.1} parent=1 // pred_check
      _
    $region7: #{tpu_custom_call.1} parent=1 // pred_check_branch
      %44 = sbr.rel (0) target = $region9
    $region8: #{tpu_custom_call.1} parent=1 // pred_region
      %s46 = ssub.s32 2560, 2560
      %47 = vsyncadd [#allocation6], %s46
      %s48 = sshll.u32 [#allocation5], 4
      %s49 = int_to_ptr.vmem [resolvable:$true] %s48
      %54 = dma.hbm_to_vmem [thread:$0]  %s1, 2560, %s49, [#allocation6], 256, 256, 16
    $region9: #{tpu_custom_call.1} parent=1 // pred_fallthru
      _
    // Predicated region
    $region10: #{tpu_custom_call.1} parent=1 // pred_check
      _
    $region11: #{tpu_custom_call.1} parent=1 // pred_check_branch
      %56 = sbr.rel (0) target = $region13
    $region12: #{tpu_custom_call.1} parent=1 // pred_region
      %s58 = ssub.s32 2560, 2560
      %59 = vsyncadd [#allocation6], %s58
      %s60 = sshll.u32 [#allocation7], 4
      %s61 = int_to_ptr.vmem [resolvable:$true] %s60
      %66 = dma.hbm_to_vmem [thread:$0]  %s2, 2560, %s61, [#allocation6], 256, 256, 16
    $region13: #{tpu_custom_call.1} parent=1 // pred_fallthru
      _
    // Predicated region
    $region14: #{tpu_custom_call.1} parent=1 // pred_check
      _
    $region15: #{tpu_custom_call.1} parent=1 // pred_check_branch
      %68 = sbr.rel (0) target = $region17
    $region16: #{tpu_custom_call.1} parent=1 // pred_region
      %s70 = ssub.s32 2560, 2560
      %71 = vsyncadd [#allocation9], %s70
      %s72 = sshll.u32 [#allocation8], 4
      %s73 = int_to_ptr.vmem [resolvable:$true] %s72
      %78 = dma.hbm_to_vmem [thread:$0]  %s3, 2560, %s73, [#allocation9], 256, 256, 16
    $region17: #{tpu_custom_call.1} parent=1 // pred_fallthru
      _
    // Predicated region
    $region18: #{tpu_custom_call.1} parent=1 // pred_check
      _
    $region19: #{tpu_custom_call.1} parent=1 // pred_check_branch
      %80 = sbr.rel (0) target = $region21
    $region20: #{tpu_custom_call.1} parent=1 // pred_region
      %s82 = ssub.s32 2560, 2560
      %83 = vsyncadd [#allocation9], %s82
      %s84 = sshll.u32 [#allocation10], 4
      %s85 = int_to_ptr.vmem [resolvable:$true] %s84
      %90 = dma.hbm_to_vmem [thread:$0]  %s4, 2560, %s85, [#allocation9], 256, 256, 16
    $region21: #{tpu_custom_call.1} parent=1 // pred_fallthru
      _
    // Predicated region
    $region22: #{tpu_custom_call.1} parent=1 // pred_check
      _
    $region23: #{tpu_custom_call.1} parent=1 // pred_check_branch
      %92 = sbr.rel (0) target = $region25
    $region24: #{tpu_custom_call.1} parent=1 // pred_region
      %s94 = ssub.s32 2560, 2560
      %95 = vsyncadd [#allocation12], %s94
      %s96 = sshll.u32 [#allocation11], 4
      %s97 = int_to_ptr.vmem [resolvable:$true] %s96
      %102 = dma.hbm_to_vmem [thread:$0]  %s5, 2560, %s97, [#allocation12], 256, 256, 16
    $region25: #{tpu_custom_call.1} parent=1 // pred_fallthru
      _
    // Predicated region
    $region26: #{tpu_custom_call.1} parent=1 // pred_check
      _
    $region27: #{tpu_custom_call.1} parent=1 // pred_check_branch
      %104 = sbr.rel (0) target = $region29
    $region28: #{tpu_custom_call.1} parent=1 // pred_region
      %s106 = ssub.s32 1280, 1280
      %107 = vsyncadd [#allocation12], %s106
      %s108 = sshll.u32 [#allocation13], 4
      %s109 = int_to_ptr.vmem [resolvable:$true] %s108
      %114 = dma.hbm_to_vmem [thread:$0]  %s6, 1280, %s109, [#allocation12], 256, 256, 16
    $region29: #{tpu_custom_call.1} parent=1 // pred_fallthru
      _
    // Predicated region
    $region30: #{tpu_custom_call.1} parent=1 // pred_check
      _
    $region31: #{tpu_custom_call.1} parent=1 // pred_check_branch
      %116 = sbr.rel (0) target = $region33
    $region32: #{tpu_custom_call.1} parent=1 // pred_region
      %s118 = ssub.s32 1280, 1280
      %119 = vsyncadd [#allocation15], %s118
      %s120 = sshll.u32 [#allocation14], 4
      %s121 = int_to_ptr.vmem [resolvable:$true] %s120
      %126 = dma.hbm_to_vmem [thread:$0]  %s7, 1280, %s121, [#allocation15], 256, 256, 16
    $region33: #{tpu_custom_call.1} parent=1 // pred_fallthru
      _
    // Predicated region
    $region34: #{tpu_custom_call.1} parent=1 // pred_check
      _
    $region35: #{tpu_custom_call.1} parent=1 // pred_check_branch
      %128 = sbr.rel (0) target = $region37
    $region36: #{tpu_custom_call.1} parent=1 // pred_region
      %s130 = ssub.s32 1280, 1280
      %131 = vsyncadd [#allocation15], %s130
      %s132 = sshll.u32 [#allocation16], 4
      %s133 = int_to_ptr.vmem [resolvable:$true] %s132
      %138 = dma.hbm_to_vmem [thread:$0]  %s8, 1280, %s133, [#allocation15], 256, 256, 16
    $region37: #{tpu_custom_call.1} parent=1 // pred_fallthru
      _
    // Predicated region
    $region38: #{tpu_custom_call.1} parent=1 // pred_check
      _
    $region39: #{tpu_custom_call.1} parent=1 // pred_check_branch
      %140 = sbr.rel (0) target = $region41
    $region40: #{tpu_custom_call.1} parent=1 // pred_region
      %s142 = ssub.s32 1280, 1280
      %143 = vsyncadd [#allocation18], %s142
      %s144 = sshll.u32 [#allocation17], 4
      %s145 = int_to_ptr.vmem [resolvable:$true] %s144
      %150 = dma.hbm_to_vmem [thread:$0]  %s9, 1280, %s145, [#allocation18], 256, 256, 16
    $region41: #{tpu_custom_call.1} parent=1 // pred_fallthru
      _
    // Predicated region
    $region42: #{tpu_custom_call.1} parent=1 // pred_check
      _
    $region43: #{tpu_custom_call.1} parent=1 // pred_check_branch
      %152 = sbr.rel (0) target = $region45
    $region44: #{tpu_custom_call.1} parent=1 // pred_region
      %s154 = ssub.s32 1280, 1280
      %155 = vsyncadd [#allocation18], %s154
      %s156 = sshll.u32 [#allocation19], 4
      %s157 = int_to_ptr.vmem [resolvable:$true] %s156
      %162 = dma.hbm_to_vmem [thread:$0]  %s10, 1280, %s157, [#allocation18], 256, 256, 16
    $region45: #{tpu_custom_call.1} parent=1 // pred_fallthru
      _
    // Predicated region
    $region46: #{tpu_custom_call.1} parent=1 // pred_check
      _
    $region47: #{tpu_custom_call.1} parent=1 // pred_check_branch
      %164 = sbr.rel (0) target = $region49
    $region48: #{tpu_custom_call.1} parent=1 // pred_region
      %s166 = ssub.s32 1280, 1280
      %167 = vsyncadd [#allocation21], %s166
      %s168 = sshll.u32 [#allocation20], 4
      %s169 = int_to_ptr.vmem [resolvable:$true] %s168
      %174 = dma.hbm_to_vmem [thread:$0]  %s11, 1280, %s169, [#allocation21], 256, 256, 16
    $region49: #{tpu_custom_call.1} parent=1 // pred_fallthru
      _
    // Predicated region
    $region50: #{tpu_custom_call.1} parent=1 // pred_check
      _
    $region51: #{tpu_custom_call.1} parent=1 // pred_check_branch
      %176 = sbr.rel (0) target = $region53
    $region52: #{tpu_custom_call.1} parent=1 // pred_region
      %s178 = ssub.s32 2560, 2560
      %179 = vsyncadd [#allocation21], %s178
      %s180 = sshll.u32 [#allocation22], 4
      %s181 = int_to_ptr.vmem [resolvable:$true] %s180
      %186 = dma.hbm_to_vmem [thread:$0]  %s12, 2560, %s181, [#allocation21], 256, 256, 16
    $region53: #{tpu_custom_call.1} parent=1 // pred_fallthru
      _
    // Predicated region
    $region54: #{tpu_custom_call.1} parent=1 // pred_check
      _
    $region55: #{tpu_custom_call.1} parent=1 // pred_check_branch
      %188 = sbr.rel (0) target = $region57
    $region56: #{tpu_custom_call.1} parent=1 // pred_region
      %s190 = ssub.s32 2560, 2560
      %191 = vsyncadd [#allocation24], %s190
      %s192 = sshll.u32 [#allocation23], 4
      %s193 = int_to_ptr.vmem [resolvable:$true] %s192
      %198 = dma.hbm_to_vmem [thread:$0]  %s13, 2560, %s193, [#allocation24], 256, 256, 16
    $region57: #{tpu_custom_call.1} parent=1 // pred_fallthru
      _
    // Predicated region
    $region58: #{tpu_custom_call.1} parent=1 // pred_check
      _
    $region59: #{tpu_custom_call.1} parent=1 // pred_check_branch
      %200 = sbr.rel (0) target = $region61
    $region60: #{tpu_custom_call.1} parent=1 // pred_region
      %s202 = ssub.s32 1280, 1280
      %203 = vsyncadd [#allocation24], %s202
      %s204 = sshll.u32 [#allocation25], 4
      %s205 = int_to_ptr.vmem [resolvable:$true] %s204
      %210 = dma.hbm_to_vmem [thread:$0]  %s14, 1280, %s205, [#allocation24], 256, 256, 16
    $region61: #{tpu_custom_call.1} parent=1 // pred_fallthru
      _
    // Predicated region
    $region62: #{tpu_custom_call.1} parent=1 // pred_check
      _
    $region63: #{tpu_custom_call.1} parent=1 // pred_check_branch
      %212 = sbr.rel (0) target = $region65
    $region64: #{tpu_custom_call.1} parent=1 // pred_region
      %s214 = ssub.s32 1280, 1280
      %215 = vsyncadd [#allocation27], %s214
      %s216 = sshll.u32 [#allocation26], 4
      %s217 = int_to_ptr.vmem [resolvable:$true] %s216
      %222 = dma.hbm_to_vmem [thread:$0]  %s15, 1280, %s217, [#allocation27], 256, 256, 16
    $region65: #{tpu_custom_call.1} parent=1 // pred_fallthru
      _
    // Predicated region
    $region66: #{tpu_custom_call.1} parent=1 // pred_check
      _
    $region67: #{tpu_custom_call.1} parent=1 // pred_check_branch
      %224 = sbr.rel (0) target = $region69
    $region68: #{tpu_custom_call.1} parent=1 // pred_region
      %225 = dma.done [#allocation3], 2560
    $region69: #{tpu_custom_call.1} parent=1 // pred_fallthru
      _
    // Predicated region
    $region70: #{tpu_custom_call.1} parent=1 // pred_check
      _
    $region71: #{tpu_custom_call.1} parent=1 // pred_check_branch
      %227 = sbr.rel (0) target = $region73
    $region72: #{tpu_custom_call.1} parent=1 // pred_region
      %228 = dma.done [#allocation6], 2560
    $region73: #{tpu_custom_call.1} parent=1 // pred_fallthru
      _
    // Predicated region
    $region74: #{tpu_custom_call.1} parent=1 // pred_check
      _
    $region75: #{tpu_custom_call.1} parent=1 // pred_check_branch
      %230 = sbr.rel (0) target = $region77
    $region76: #{tpu_custom_call.1} parent=1 // pred_region
      %231 = dma.done [#allocation6], 2560
    $region77: #{tpu_custom_call.1} parent=1 // pred_fallthru
      _
    // Predicated region
    $region78: #{tpu_custom_call.1} parent=1 // pred_check
      _
    $region79: #{tpu_custom_call.1} parent=1 // pred_check_branch
      %233 = sbr.rel (0) target = $region81
    $region80: #{tpu_custom_call.1} parent=1 // pred_region
      %234 = dma.done [#allocation9], 2560
    $region81: #{tpu_custom_call.1} parent=1 // pred_fallthru
      _
    // Predicated region
    $region82: #{tpu_custom_call.1} parent=1 // pred_check
      _
    $region83: #{tpu_custom_call.1} parent=1 // pred_check_branch
      %236 = sbr.rel (0) target = $region85
    $region84: #{tpu_custom_call.1} parent=1 // pred_region
      %237 = dma.done [#allocation9], 2560
    $region85: #{tpu_custom_call.1} parent=1 // pred_fallthru
      _
    // Predicated region
    $region86: #{tpu_custom_call.1} parent=1 // pred_check
      _
    $region87: #{tpu_custom_call.1} parent=1 // pred_check_branch
      %239 = sbr.rel (0) target = $region89
    $region88: #{tpu_custom_call.1} parent=1 // pred_region
      %240 = dma.done [#allocation12], 2560
    $region89: #{tpu_custom_call.1} parent=1 // pred_fallthru
      _
    // Predicated region
    $region90: #{tpu_custom_call.1} parent=1 // pred_check
      _
    $region91: #{tpu_custom_call.1} parent=1 // pred_check_branch
      %242 = sbr.rel (0) target = $region93
    $region92: #{tpu_custom_call.1} parent=1 // pred_region
      %243 = dma.done [#allocation12], 1280
    $region93: #{tpu_custom_call.1} parent=1 // pred_fallthru
      _
    // Predicated region
    $region94: #{tpu_custom_call.1} parent=1 // pred_check
      _
    $region95: #{tpu_custom_call.1} parent=1 // pred_check_branch
      %245 = sbr.rel (0) target = $region97
    $region96: #{tpu_custom_call.1} parent=1 // pred_region
      %246 = dma.done [#allocation15], 1280
    $region97: #{tpu_custom_call.1} parent=1 // pred_fallthru
      _
    // Predicated region
    $region98: #{tpu_custom_call.1} parent=1 // pred_check
      _
    $region99: #{tpu_custom_call.1} parent=1 // pred_check_branch
      %248 = sbr.rel (0) target = $region101
    $region100: #{tpu_custom_call.1} parent=1 // pred_region
      %249 = dma.done [#allocation15], 1280
    $region101: #{tpu_custom_call.1} parent=1 // pred_fallthru
      _
    // Predicated region
    $region102: #{tpu_custom_call.1} parent=1 // pred_check
      _
    $region103: #{tpu_custom_call.1} parent=1 // pred_check_branch
      %251 = sbr.rel (0) target = $region105
    $region104: #{tpu_custom_call.1} parent=1 // pred_region
      %252 = dma.done [#allocation18], 1280
    $region105: #{tpu_custom_call.1} parent=1 // pred_fallthru
      _
    // Predicated region
    $region106: #{tpu_custom_call.1} parent=1 // pred_check
      _
    $region107: #{tpu_custom_call.1} parent=1 // pred_check_branch
      %254 = sbr.rel (0) target = $region109
    $region108: #{tpu_custom_call.1} parent=1 // pred_region
      %255 = dma.done [#allocation18], 1280
    $region109: #{tpu_custom_call.1} parent=1 // pred_fallthru
      _
    // Predicated region
    $region110: #{tpu_custom_call.1} parent=1 // pred_check
      _
    $region111: #{tpu_custom_call.1} parent=1 // pred_check_branch
      %257 = sbr.rel (0) target = $region113
    $region112: #{tpu_custom_call.1} parent=1 // pred_region
      %258 = dma.done [#allocation21], 1280
    $region113: #{tpu_custom_call.1} parent=1 // pred_fallthru
      _
    // Predicated region
    $region114: #{tpu_custom_call.1} parent=1 // pred_check
      _
    $region115: #{tpu_custom_call.1} parent=1 // pred_check_branch
      %260 = sbr.rel (0) target = $region117
    $region116: #{tpu_custom_call.1} parent=1 // pred_region
      %261 = dma.done [#allocation21], 2560
    $region117: #{tpu_custom_call.1} parent=1 // pred_fallthru
      _
    // Predicated region
    $region118: #{tpu_custom_call.1} parent=1 // pred_check
      _
    $region119: #{tpu_custom_call.1} parent=1 // pred_check_branch
      %263 = sbr.rel (0) target = $region121
    $region120: #{tpu_custom_call.1} parent=1 // pred_region
      %264 = dma.done [#allocation24], 2560
    $region121: #{tpu_custom_call.1} parent=1 // pred_fallthru
      _
    // Predicated region
    $region122: #{tpu_custom_call.1} parent=1 // pred_check
      _
    $region123: #{tpu_custom_call.1} parent=1 // pred_check_branch
      %266 = sbr.rel (0) target = $region125
    $region124: #{tpu_custom_call.1} parent=1 // pred_region
      %267 = dma.done [#allocation24], 1280
    $region125: #{tpu_custom_call.1} parent=1 // pred_fallthru
      _
    // Predicated region
    $region126: #{tpu_custom_call.1} parent=1 // pred_check
      _
    $region127: #{tpu_custom_call.1} parent=1 // pred_check_branch
      %269 = sbr.rel (0) target = $region129
    $region128: #{tpu_custom_call.1} parent=1 // pred_region
      %270 = dma.done [#allocation27], 1280
    $region129: #{tpu_custom_call.1} parent=1 // pred_fallthru
      _
    %v271 = vlaneseq
    %v272 = vand.u32 %v271, 127
    %v273 = vadd.s32 %v272, 128
    %s274 = smul.u32 0, 256
    %v275 = vstv %s274
    %v276 = vadd.s32 %v275, %v272
    %v277 = vadd.s32 %v275, %v273
    %vm278 = vcmp.lt.s32.totalorder %v276, 256
    %vm279 = vcmp.lt.s32.totalorder %v277, 256
    %v280 = vld [vmem:[#allocation22] sm:$0xff]
    %v281 = vld [vmem:[#allocation22 + $0x8] sm:$0xff]
    %v282 = vld [vmem:[#allocation22 + $0x10] sm:$0xff]
    %v283 = vld [vmem:[#allocation22 + $0x18] sm:$0xff]
    %v284 = vld [vmem:[#allocation22 + $0x20] sm:$0xff]
    %v285 = vld [vmem:[#allocation22 + $0x28] sm:$0xff]
    %v286 = vld [vmem:[#allocation22 + $0x30] sm:$0xff]
    %v287 = vld [vmem:[#allocation22 + $0x38] sm:$0xff]
    %v288 = vld [vmem:[#allocation22 + $0x40] sm:$0xff]
    %v289 = vld [vmem:[#allocation22 + $0x48] sm:$0xff]
    %v290 = vld [vmem:[#allocation22 + $0x50] sm:$0xff]
    %v291 = vld [vmem:[#allocation22 + $0x58] sm:$0xff]
    %v292 = vld [vmem:[#allocation22 + $0x60] sm:$0xff]
    %v293 = vld [vmem:[#allocation22 + $0x68] sm:$0xff]
    %v294 = vld [vmem:[#allocation22 + $0x70] sm:$0xff]
    %v295 = vld [vmem:[#allocation22 + $0x78] sm:$0xff]
    %v296 = vld [vmem:[#allocation22 + $0x80] sm:$0xff]
    %v297 = vld [vmem:[#allocation22 + $0x88] sm:$0xff]
    %v298 = vld [vmem:[#allocation22 + $0x90] sm:$0xf]
    %v299 = vld [vmem:[#allocation22 + $0x98] sm:$0xf]
    %v300 = vld [vmem:[#allocation23] sm:$0xff]
    %v301 = vld [vmem:[#allocation23 + $0x8] sm:$0xff]
    %v302 = vld [vmem:[#allocation23 + $0x10] sm:$0xff]
    %v303 = vld [vmem:[#allocation23 + $0x18] sm:$0xff]
    %v304 = vld [vmem:[#allocation23 + $0x20] sm:$0xff]
    %v305 = vld [vmem:[#allocation23 + $0x28] sm:$0xff]
    %v306 = vld [vmem:[#allocation23 + $0x30] sm:$0xff]
    %v307 = vld [vmem:[#allocation23 + $0x38] sm:$0xff]
    %v308 = vld [vmem:[#allocation23 + $0x40] sm:$0xff]
    %v309 = vld [vmem:[#allocation23 + $0x48] sm:$0xff]
    %v310 = vld [vmem:[#allocation23 + $0x50] sm:$0xff]
    %v311 = vld [vmem:[#allocation23 + $0x58] sm:$0xff]
    %v312 = vld [vmem:[#allocation23 + $0x60] sm:$0xff]
    %v313 = vld [vmem:[#allocation23 + $0x68] sm:$0xff]
    %v314 = vld [vmem:[#allocation23 + $0x70] sm:$0xff]
    %v315 = vld [vmem:[#allocation23 + $0x78] sm:$0xff]
    %v316 = vld [vmem:[#allocation23 + $0x80] sm:$0xff]
    %v317 = vld [vmem:[#allocation23 + $0x88] sm:$0xff]
    %v318 = vld [vmem:[#allocation23 + $0x90] sm:$0xf]
    %v319 = vld [vmem:[#allocation23 + $0x98] sm:$0xf]
    %v320 = vld [vmem:[#allocation25] sm:$0xff]
    %v321 = vld [vmem:[#allocation25 + $0x8] sm:$0xff]
    %v322 = vld [vmem:[#allocation25 + $0x10] sm:$0xff]
    %v323 = vld [vmem:[#allocation25 + $0x18] sm:$0xff]
    %v324 = vld [vmem:[#allocation25 + $0x20] sm:$0xff]
    %v325 = vld [vmem:[#allocation25 + $0x28] sm:$0xff]
    %v326 = vld [vmem:[#allocation25 + $0x30] sm:$0xff]
    %v327 = vld [vmem:[#allocation25 + $0x38] sm:$0xff]
    %v328 = vld [vmem:[#allocation25 + $0x40] sm:$0x3f]
    %v329 = vld [vmem:[#allocation25 + $0x48] sm:$0x3f]
    %v330 = vld [vmem:[#allocation26] sm:$0xff]
    %v331 = vld [vmem:[#allocation26 + $0x8] sm:$0xff]
    %v332 = vld [vmem:[#allocation26 + $0x10] sm:$0xff]
    %v333 = vld [vmem:[#allocation26 + $0x18] sm:$0xff]
    %v334 = vld [vmem:[#allocation26 + $0x20] sm:$0xff]
    %v335 = vld [vmem:[#allocation26 + $0x28] sm:$0xff]
    %v336 = vld [vmem:[#allocation26 + $0x30] sm:$0xff]
    %v337 = vld [vmem:[#allocation26 + $0x38] sm:$0xff]
    %v338 = vld [vmem:[#allocation26 + $0x40] sm:$0x3f]
    %v339 = vld [vmem:[#allocation26 + $0x48] sm:$0x3f]
    %v340 = vld [vmem:[#allocation2] sm:$0xff]
    %v341 = vld [vmem:[#allocation2 + $0x8] sm:$0xff]
    %v342 = vld [vmem:[#allocation2 + $0x10] sm:$0xff]
    %v343 = vld [vmem:[#allocation2 + $0x18] sm:$0xff]
    %v344 = vld [vmem:[#allocation2 + $0x20] sm:$0xff]
    %v345 = vld [vmem:[#allocation2 + $0x28] sm:$0xff]
    %v346 = vld [vmem:[#allocation2 + $0x30] sm:$0xff]
    %v347 = vld [vmem:[#allocation2 + $0x38] sm:$0xff]
    %v348 = vld [vmem:[#allocation2 + $0x40] sm:$0xff]
    %v349 = vld [vmem:[#allocation2 + $0x48] sm:$0xff]
    %v350 = vld [vmem:[#allocation2 + $0x50] sm:$0xff]
    %v351 = vld [vmem:[#allocation2 + $0x58] sm:$0xff]
    %v352 = vld [vmem:[#allocation2 + $0x60] sm:$0xff]
    %v353 = vld [vmem:[#allocation2 + $0x68] sm:$0xff]
    %v354 = vld [vmem:[#allocation2 + $0x70] sm:$0xff]
    %v355 = vld [vmem:[#allocation2 + $0x78] sm:$0xff]
    %v356 = vld [vmem:[#allocation2 + $0x80] sm:$0xff]
    %v357 = vld [vmem:[#allocation2 + $0x88] sm:$0xff]
    %v358 = vld [vmem:[#allocation2 + $0x90] sm:$0xf]
    %v359 = vld [vmem:[#allocation2 + $0x98] sm:$0xf]
    %v360 = vsub.f32 %v340, %v280
    %v361 = vsub.f32 %v341, %v281
    %v362 = vsub.f32 %v342, %v282
    %v363 = vsub.f32 %v343, %v283
    %v364 = vsub.f32 %v344, %v284
    %v365 = vsub.f32 %v345, %v285
    %v366 = vsub.f32 %v346, %v286
    %v367 = vsub.f32 %v347, %v287
    %v368 = vsub.f32 %v348, %v288
    %v369 = vsub.f32 %v349, %v289
    %v370 = vsub.f32 %v350, %v290
    %v371 = vsub.f32 %v351, %v291
    %v372 = vsub.f32 %v352, %v292
    %v373 = vsub.f32 %v353, %v293
    %v374 = vsub.f32 %v354, %v294
    %v375 = vsub.f32 %v355, %v295
    %v376 = vsub.f32 %v356, %v296
    %v377 = vsub.f32 %v357, %v297
    %v378 = vsub.f32 %v358, %v298
    %v379 = vsub.f32 %v359, %v299
    %v380 = vmul.f32 %v360, %v300
    %v381 = vmul.f32 %v361, %v301
    %v382 = vmul.f32 %v362, %v302
    %v383 = vmul.f32 %v363, %v303
    %v384 = vmul.f32 %v364, %v304
    %v385 = vmul.f32 %v365, %v305
    %v386 = vmul.f32 %v366, %v306
    %v387 = vmul.f32 %v367, %v307
    %v388 = vmul.f32 %v368, %v308
    %v389 = vmul.f32 %v369, %v309
    %v390 = vmul.f32 %v370, %v310
    %v391 = vmul.f32 %v371, %v311
    %v392 = vmul.f32 %v372, %v312
    %v393 = vmul.f32 %v373, %v313
    %v394 = vmul.f32 %v374, %v314
    %v395 = vmul.f32 %v375, %v315
    %v396 = vmul.f32 %v376, %v316
    %v397 = vmul.f32 %v377, %v317
    %v398 = vmul.f32 %v378, %v318
    %v399 = vmul.f32 %v379, %v319
    %v400 = vmul.f32 %v380, %v380
    %v401 = vmul.f32 %v381, %v381
    %v402 = vmul.f32 %v382, %v382
    %v403 = vmul.f32 %v383, %v383
    %v404 = vmul.f32 %v384, %v384
    %v405 = vmul.f32 %v385, %v385
    %v406 = vmul.f32 %v386, %v386
    %v407 = vmul.f32 %v387, %v387
    %v408 = vmul.f32 %v388, %v388
    %v409 = vmul.f32 %v389, %v389
    %v410 = vmul.f32 %v390, %v390
    %v411 = vmul.f32 %v391, %v391
    %v412 = vmul.f32 %v392, %v392
    %v413 = vmul.f32 %v393, %v393
    %v414 = vmul.f32 %v394, %v394
    %v415 = vmul.f32 %v395, %v395
    %v416 = vmul.f32 %v396, %v396
    %v417 = vmul.f32 %v397, %v397
    %v418 = vmul.f32 %v398, %v398
    %v419 = vmul.f32 %v399, %v399
    %v420 = vadd.f32 %v400, %v402
    %v421 = vadd.f32 %v420, %v404
    %v422 = vadd.f32 %v421, %v406
    %v423 = vadd.f32 %v422, %v408
    %v424 = vadd.f32 %v423, %v410
    %v425 = vadd.f32 %v424, %v412
    %v426 = vadd.f32 %v425, %v414
    %v427 = vadd.f32 %v426, %v416
    %vm428 = vcmask 1043456
    %v429 = vsel %vm428, %v418, 0.0
    %v430 = vadd.f32 %v427, %v429
    %v431 = vrot.slane %v430, 4
    %v432 = vadd.f32 %v430, %v431
    %v433 = vrot.slane %v432, 2
    %v434 = vadd.f32 %v432, %v433
    %v435 = vrot.slane %v434, 1
    %v436 = vadd.f32 %v434, %v435
    %v437 = vadd.f32 %v401, %v403
    %v438 = vadd.f32 %v437, %v405
    %v439 = vadd.f32 %v438, %v407
    %v440 = vadd.f32 %v439, %v409
    %v441 = vadd.f32 %v440, %v411
    %v442 = vadd.f32 %v441, %v413
    %v443 = vadd.f32 %v442, %v415
    %v444 = vadd.f32 %v443, %v417
    %v445 = vsel %vm428, %v419, 0.0
    %v446 = vadd.f32 %v444, %v445
    %v447 = vrot.slane %v446, 4
    %v448 = vadd.f32 %v446, %v447
    %v449 = vrot.slane %v448, 2
    %v450 = vadd.f32 %v448, %v449
    %v451 = vrot.slane %v450, 1
    %v452 = vadd.f32 %v450, %v451
    %v453 = vadd.f32 %v436, 0.0
    %v454 = vadd.f32 %v452, 0.0
    %v455 = vld [vmem:[#allocation13] sm:$0xff]
    %v456 = vld [vmem:[#allocation13 + $0x8] sm:$0xff]
    %v457 = vld [vmem:[#allocation13 + $0x10] sm:$0xff]
    %v458 = vld [vmem:[#allocation13 + $0x18] sm:$0xff]
    %v459 = vld [vmem:[#allocation13 + $0x20] sm:$0xff]
    %v460 = vld [vmem:[#allocation13 + $0x28] sm:$0xff]
    %v461 = vld [vmem:[#allocation13 + $0x30] sm:$0xff]
    %v462 = vld [vmem:[#allocation13 + $0x38] sm:$0xff]
    %v463 = vld [vmem:[#allocation13 + $0x40] sm:$0x3f]
    %v464 = vld [vmem:[#allocation13 + $0x48] sm:$0x3f]
    %v465 = vsub.f32 %v455, %v320
    %v466 = vsub.f32 %v456, %v321
    %v467 = vsub.f32 %v457, %v322
    %v468 = vsub.f32 %v458, %v323
    %v469 = vsub.f32 %v459, %v324
    %v470 = vsub.f32 %v460, %v325
    %v471 = vsub.f32 %v461, %v326
    %v472 = vsub.f32 %v462, %v327
    %v473 = vsub.f32 %v463, %v328
    %v474 = vsub.f32 %v464, %v329
    %v475 = vmul.f32 %v465, %v330
    %v476 = vmul.f32 %v466, %v331
    %v477 = vmul.f32 %v467, %v332
    %v478 = vmul.f32 %v468, %v333
    %v479 = vmul.f32 %v469, %v334
    %v480 = vmul.f32 %v470, %v335
    %v481 = vmul.f32 %v471, %v336
    %v482 = vmul.f32 %v472, %v337
    %v483 = vmul.f32 %v473, %v338
    %v484 = vmul.f32 %v474, %v339
    %v485 = vmul.f32 %v475, %v475
    %v486 = vmul.f32 %v476, %v476
    %v487 = vmul.f32 %v477, %v477
    %v488 = vmul.f32 %v478, %v478
    %v489 = vmul.f32 %v479, %v479
    %v490 = vmul.f32 %v480, %v480
    %v491 = vmul.f32 %v481, %v481
    %v492 = vmul.f32 %v482, %v482
    %v493 = vmul.f32 %v483, %v483
    %v494 = vmul.f32 %v484, %v484
    %v495 = vadd.f32 %v485, %v487
    %v496 = vadd.f32 %v495, %v489
    %v497 = vadd.f32 %v496, %v491
    %vm498 = vcmask 1045504
    %v499 = vsel %vm498, %v493, 0.0
    %v500 = vadd.f32 %v497, %v499
    %v501 = vrot.slane %v500, 4
    %v502 = vadd.f32 %v500, %v501
    %v503 = vrot.slane %v502, 2
    %v504 = vadd.f32 %v502, %v503
    %v505 = vrot.slane %v504, 1
    %v506 = vadd.f32 %v504, %v505
    %v507 = vadd.f32 %v486, %v488
    %v508 = vadd.f32 %v507, %v490
    %v509 = vadd.f32 %v508, %v492
    %v510 = vsel %vm498, %v494, 0.0
    %v511 = vadd.f32 %v509, %v510
    %v512 = vrot.slane %v511, 4
    %v513 = vadd.f32 %v511, %v512
    %v514 = vrot.slane %v513, 2
    %v515 = vadd.f32 %v513, %v514
    %v516 = vrot.slane %v515, 1
    %v517 = vadd.f32 %v515, %v516
    %v518 = vadd.f32 %v506, 0.0
    %v519 = vadd.f32 %v517, 0.0
    %v520 = vld [vmem:[#allocation5] sm:$0xff]
    %v521 = vld [vmem:[#allocation5 + $0x8] sm:$0xff]
    %v522 = vld [vmem:[#allocation5 + $0x10] sm:$0xff]
    %v523 = vld [vmem:[#allocation5 + $0x18] sm:$0xff]
    %v524 = vld [vmem:[#allocation5 + $0x20] sm:$0xff]
    %v525 = vld [vmem:[#allocation5 + $0x28] sm:$0xff]
    %v526 = vld [vmem:[#allocation5 + $0x30] sm:$0xff]
    %v527 = vld [vmem:[#allocation5 + $0x38] sm:$0xff]
    %v528 = vld [vmem:[#allocation5 + $0x40] sm:$0xff]
    %v529 = vld [vmem:[#allocation5 + $0x48] sm:$0xff]
    %v530 = vld [vmem:[#allocation5 + $0x50] sm:$0xff]
    %v531 = vld [vmem:[#allocation5 + $0x58] sm:$0xff]
    %v532 = vld [vmem:[#allocation5 + $0x60] sm:$0xff]
    %v533 = vld [vmem:[#allocation5 + $0x68] sm:$0xff]
    %v534 = vld [vmem:[#allocation5 + $0x70] sm:$0xff]
    %v535 = vld [vmem:[#allocation5 + $0x78] sm:$0xff]
    %v536 = vld [vmem:[#allocation5 + $0x80] sm:$0xff]
    %v537 = vld [vmem:[#allocation5 + $0x88] sm:$0xff]
    %v538 = vld [vmem:[#allocation5 + $0x90] sm:$0xf]
    %v539 = vld [vmem:[#allocation5 + $0x98] sm:$0xf]
    %v540 = vsub.f32 %v520, %v280
    %v541 = vsub.f32 %v521, %v281
    %v542 = vsub.f32 %v522, %v282
    %v543 = vsub.f32 %v523, %v283
    %v544 = vsub.f32 %v524, %v284
    %v545 = vsub.f32 %v525, %v285
    %v546 = vsub.f32 %v526, %v286
    %v547 = vsub.f32 %v527, %v287
    %v548 = vsub.f32 %v528, %v288
    %v549 = vsub.f32 %v529, %v289
    %v550 = vsub.f32 %v530, %v290
    %v551 = vsub.f32 %v531, %v291
    %v552 = vsub.f32 %v532, %v292
    %v553 = vsub.f32 %v533, %v293
    %v554 = vsub.f32 %v534, %v294
    %v555 = vsub.f32 %v535, %v295
    %v556 = vsub.f32 %v536, %v296
    %v557 = vsub.f32 %v537, %v297
    %v558 = vsub.f32 %v538, %v298
    %v559 = vsub.f32 %v539, %v299
    %v560 = vmul.f32 %v540, %v300
    %v561 = vmul.f32 %v541, %v301
    %v562 = vmul.f32 %v542, %v302
    %v563 = vmul.f32 %v543, %v303
    %v564 = vmul.f32 %v544, %v304
    %v565 = vmul.f32 %v545, %v305
    %v566 = vmul.f32 %v546, %v306
    %v567 = vmul.f32 %v547, %v307
    %v568 = vmul.f32 %v548, %v308
    %v569 = vmul.f32 %v549, %v309
    %v570 = vmul.f32 %v550, %v310
    %v571 = vmul.f32 %v551, %v311
    %v572 = vmul.f32 %v552, %v312
    %v573 = vmul.f32 %v553, %v313
    %v574 = vmul.f32 %v554, %v314
    %v575 = vmul.f32 %v555, %v315
    %v576 = vmul.f32 %v556, %v316
    %v577 = vmul.f32 %v557, %v317
    %v578 = vmul.f32 %v558, %v318
    %v579 = vmul.f32 %v559, %v319
    %v580 = vmul.f32 %v560, %v560
    %v581 = vmul.f32 %v561, %v561
    %v582 = vmul.f32 %v562, %v562
    %v583 = vmul.f32 %v563, %v563
    %v584 = vmul.f32 %v564, %v564
    %v585 = vmul.f32 %v565, %v565
    %v586 = vmul.f32 %v566, %v566
    %v587 = vmul.f32 %v567, %v567
    %v588 = vmul.f32 %v568, %v568
    %v589 = vmul.f32 %v569, %v569
    %v590 = vmul.f32 %v570, %v570
    %v591 = vmul.f32 %v571, %v571
    %v592 = vmul.f32 %v572, %v572
    %v593 = vmul.f32 %v573, %v573
    %v594 = vmul.f32 %v574, %v574
    %v595 = vmul.f32 %v575, %v575
    %v596 = vmul.f32 %v576, %v576
    %v597 = vmul.f32 %v577, %v577
    %v598 = vmul.f32 %v578, %v578
    %v599 = vmul.f32 %v579, %v579
    %v600 = vadd.f32 %v580, %v582
    %v601 = vadd.f32 %v600, %v584
    %v602 = vadd.f32 %v601, %v586
    %v603 = vadd.f32 %v602, %v588
    %v604 = vadd.f32 %v603, %v590
    %v605 = vadd.f32 %v604, %v592
    %v606 = vadd.f32 %v605, %v594
    %v607 = vadd.f32 %v606, %v596
    %v608 = vsel %vm428, %v598, 0.0
    %v609 = vadd.f32 %v607, %v608
    %v610 = vrot.slane %v609, 4
    %v611 = vadd.f32 %v609, %v610
    %v612 = vrot.slane %v611, 2
    %v613 = vadd.f32 %v611, %v612
    %v614 = vrot.slane %v613, 1
    %v615 = vadd.f32 %v613, %v614
    %v616 = vadd.f32 %v581, %v583
    %v617 = vadd.f32 %v616, %v585
    %v618 = vadd.f32 %v617, %v587
    %v619 = vadd.f32 %v618, %v589
    %v620 = vadd.f32 %v619, %v591
    %v621 = vadd.f32 %v620, %v593
    %v622 = vadd.f32 %v621, %v595
    %v623 = vadd.f32 %v622, %v597
    %v624 = vsel %vm428, %v599, 0.0
    %v625 = vadd.f32 %v623, %v624
    %v626 = vrot.slane %v625, 4
    %v627 = vadd.f32 %v625, %v626
    %v628 = vrot.slane %v627, 2
    %v629 = vadd.f32 %v627, %v628
    %v630 = vrot.slane %v629, 1
    %v631 = vadd.f32 %v629, %v630
    %v632 = vadd.f32 %v453, %v615
    %v633 = vadd.f32 %v454, %v631
    %v634 = vld [vmem:[#allocation14] sm:$0xff]
    %v635 = vld [vmem:[#allocation14 + $0x8] sm:$0xff]
    %v636 = vld [vmem:[#allocation14 + $0x10] sm:$0xff]
    %v637 = vld [vmem:[#allocation14 + $0x18] sm:$0xff]
    %v638 = vld [vmem:[#allocation14 + $0x20] sm:$0xff]
    %v639 = vld [vmem:[#allocation14 + $0x28] sm:$0xff]
    %v640 = vld [vmem:[#allocation14 + $0x30] sm:$0xff]
    %v641 = vld [vmem:[#allocation14 + $0x38] sm:$0xff]
    %v642 = vld [vmem:[#allocation14 + $0x40] sm:$0x3f]
    %v643 = vld [vmem:[#allocation14 + $0x48] sm:$0x3f]
    %v644 = vsub.f32 %v634, %v320
    %v645 = vsub.f32 %v635, %v321
    %v646 = vsub.f32 %v636, %v322
    %v647 = vsub.f32 %v637, %v323
    %v648 = vsub.f32 %v638, %v324
    %v649 = vsub.f32 %v639, %v325
    %v650 = vsub.f32 %v640, %v326
    %v651 = vsub.f32 %v641, %v327
    %v652 = vsub.f32 %v642, %v328
    %v653 = vsub.f32 %v643, %v329
    %v654 = vmul.f32 %v644, %v330
    %v655 = vmul.f32 %v645, %v331
    %v656 = vmul.f32 %v646, %v332
    %v657 = vmul.f32 %v647, %v333
    %v658 = vmul.f32 %v648, %v334
    %v659 = vmul.f32 %v649, %v335
    %v660 = vmul.f32 %v650, %v336
    %v661 = vmul.f32 %v651, %v337
    %v662 = vmul.f32 %v652, %v338
    %v663 = vmul.f32 %v653, %v339
    %v664 = vmul.f32 %v654, %v654
    %v665 = vmul.f32 %v655, %v655
    %v666 = vmul.f32 %v656, %v656
    %v667 = vmul.f32 %v657, %v657
    %v668 = vmul.f32 %v658, %v658
    %v669 = vmul.f32 %v659, %v659
    %v670 = vmul.f32 %v660, %v660
    %v671 = vmul.f32 %v661, %v661
    %v672 = vmul.f32 %v662, %v662
    %v673 = vmul.f32 %v663, %v663
    %v674 = vadd.f32 %v664, %v666
    %v675 = vadd.f32 %v674, %v668
    %v676 = vadd.f32 %v675, %v670
    %v677 = vsel %vm498, %v672, 0.0
    %v678 = vadd.f32 %v676, %v677
    %v679 = vrot.slane %v678, 4
    %v680 = vadd.f32 %v678, %v679
    %v681 = vrot.slane %v680, 2
    %v682 = vadd.f32 %v680, %v681
    %v683 = vrot.slane %v682, 1
    %v684 = vadd.f32 %v682, %v683
    %v685 = vadd.f32 %v665, %v667
    %v686 = vadd.f32 %v685, %v669
    %v687 = vadd.f32 %v686, %v671
    %v688 = vsel %vm498, %v673, 0.0
    %v689 = vadd.f32 %v687, %v688
    %v690 = vrot.slane %v689, 4
    %v691 = vadd.f32 %v689, %v690
    %v692 = vrot.slane %v691, 2
    %v693 = vadd.f32 %v691, %v692
    %v694 = vrot.slane %v693, 1
    %v695 = vadd.f32 %v693, %v694
    %v696 = vadd.f32 %v518, %v684
    %v697 = vadd.f32 %v519, %v695
    %v698 = vld [vmem:[#allocation7] sm:$0xff]
    %v699 = vld [vmem:[#allocation7 + $0x8] sm:$0xff]
    %v700 = vld [vmem:[#allocation7 + $0x10] sm:$0xff]
    %v701 = vld [vmem:[#allocation7 + $0x18] sm:$0xff]
    %v702 = vld [vmem:[#allocation7 + $0x20] sm:$0xff]
    %v703 = vld [vmem:[#allocation7 + $0x28] sm:$0xff]
    %v704 = vld [vmem:[#allocation7 + $0x30] sm:$0xff]
    %v705 = vld [vmem:[#allocation7 + $0x38] sm:$0xff]
    %v706 = vld [vmem:[#allocation7 + $0x40] sm:$0xff]
    %v707 = vld [vmem:[#allocation7 + $0x48] sm:$0xff]
    %v708 = vld [vmem:[#allocation7 + $0x50] sm:$0xff]
    %v709 = vld [vmem:[#allocation7 + $0x58] sm:$0xff]
    %v710 = vld [vmem:[#allocation7 + $0x60] sm:$0xff]
    %v711 = vld [vmem:[#allocation7 + $0x68] sm:$0xff]
    %v712 = vld [vmem:[#allocation7 + $0x70] sm:$0xff]
    %v713 = vld [vmem:[#allocation7 + $0x78] sm:$0xff]
    %v714 = vld [vmem:[#allocation7 + $0x80] sm:$0xff]
    %v715 = vld [vmem:[#allocation7 + $0x88] sm:$0xff]
    %v716 = vld [vmem:[#allocation7 + $0x90] sm:$0xf]
    %v717 = vld [vmem:[#allocation7 + $0x98] sm:$0xf]
    %v718 = vsub.f32 %v698, %v280
    %v719 = vsub.f32 %v699, %v281
    %v720 = vsub.f32 %v700, %v282
    %v721 = vsub.f32 %v701, %v283
    %v722 = vsub.f32 %v702, %v284
    %v723 = vsub.f32 %v703, %v285
    %v724 = vsub.f32 %v704, %v286
    %v725 = vsub.f32 %v705, %v287
    %v726 = vsub.f32 %v706, %v288
    %v727 = vsub.f32 %v707, %v289
    %v728 = vsub.f32 %v708, %v290
    %v729 = vsub.f32 %v709, %v291
    %v730 = vsub.f32 %v710, %v292
    %v731 = vsub.f32 %v711, %v293
    %v732 = vsub.f32 %v712, %v294
    %v733 = vsub.f32 %v713, %v295
    %v734 = vsub.f32 %v714, %v296
    %v735 = vsub.f32 %v715, %v297
    %v736 = vsub.f32 %v716, %v298
    %v737 = vsub.f32 %v717, %v299
    %v738 = vmul.f32 %v718, %v300
    %v739 = vmul.f32 %v719, %v301
    %v740 = vmul.f32 %v720, %v302
    %v741 = vmul.f32 %v721, %v303
    %v742 = vmul.f32 %v722, %v304
    %v743 = vmul.f32 %v723, %v305
    %v744 = vmul.f32 %v724, %v306
    %v745 = vmul.f32 %v725, %v307
    %v746 = vmul.f32 %v726, %v308
    %v747 = vmul.f32 %v727, %v309
    %v748 = vmul.f32 %v728, %v310
    %v749 = vmul.f32 %v729, %v311
    %v750 = vmul.f32 %v730, %v312
    %v751 = vmul.f32 %v731, %v313
    %v752 = vmul.f32 %v732, %v314
    %v753 = vmul.f32 %v733, %v315
    %v754 = vmul.f32 %v734, %v316
    %v755 = vmul.f32 %v735, %v317
    %v756 = vmul.f32 %v736, %v318
    %v757 = vmul.f32 %v737, %v319
    %v758 = vmul.f32 %v738, %v738
    %v759 = vmul.f32 %v739, %v739
    %v760 = vmul.f32 %v740, %v740
    %v761 = vmul.f32 %v741, %v741
    %v762 = vmul.f32 %v742, %v742
    %v763 = vmul.f32 %v743, %v743
    %v764 = vmul.f32 %v744, %v744
    %v765 = vmul.f32 %v745, %v745
    %v766 = vmul.f32 %v746, %v746
    %v767 = vmul.f32 %v747, %v747
    %v768 = vmul.f32 %v748, %v748
    %v769 = vmul.f32 %v749, %v749
    %v770 = vmul.f32 %v750, %v750
    %v771 = vmul.f32 %v751, %v751
    %v772 = vmul.f32 %v752, %v752
    %v773 = vmul.f32 %v753, %v753
    %v774 = vmul.f32 %v754, %v754
    %v775 = vmul.f32 %v755, %v755
    %v776 = vmul.f32 %v756, %v756
    %v777 = vmul.f32 %v757, %v757
    %v778 = vadd.f32 %v758, %v760
    %v779 = vadd.f32 %v778, %v762
    %v780 = vadd.f32 %v779, %v764
    %v781 = vadd.f32 %v780, %v766
    %v782 = vadd.f32 %v781, %v768
    %v783 = vadd.f32 %v782, %v770
    %v784 = vadd.f32 %v783, %v772
    %v785 = vadd.f32 %v784, %v774
    %v786 = vsel %vm428, %v776, 0.0
    %v787 = vadd.f32 %v785, %v786
    %v788 = vrot.slane %v787, 4
    %v789 = vadd.f32 %v787, %v788
    %v790 = vrot.slane %v789, 2
    %v791 = vadd.f32 %v789, %v790
    %v792 = vrot.slane %v791, 1
    %v793 = vadd.f32 %v791, %v792
    %v794 = vadd.f32 %v759, %v761
    %v795 = vadd.f32 %v794, %v763
    %v796 = vadd.f32 %v795, %v765
    %v797 = vadd.f32 %v796, %v767
    %v798 = vadd.f32 %v797, %v769
    %v799 = vadd.f32 %v798, %v771
    %v800 = vadd.f32 %v799, %v773
    %v801 = vadd.f32 %v800, %v775
    %v802 = vsel %vm428, %v777, 0.0
    %v803 = vadd.f32 %v801, %v802
    %v804 = vrot.slane %v803, 4
    %v805 = vadd.f32 %v803, %v804
    %v806 = vrot.slane %v805, 2
    %v807 = vadd.f32 %v805, %v806
    %v808 = vrot.slane %v807, 1
    %v809 = vadd.f32 %v807, %v808
    %v810 = vadd.f32 %v632, %v793
    %v811 = vadd.f32 %v633, %v809
    %v812 = vld [vmem:[#allocation16] sm:$0xff]
    %v813 = vld [vmem:[#allocation16 + $0x8] sm:$0xff]
    %v814 = vld [vmem:[#allocation16 + $0x10] sm:$0xff]
    %v815 = vld [vmem:[#allocation16 + $0x18] sm:$0xff]
    %v816 = vld [vmem:[#allocation16 + $0x20] sm:$0xff]
    %v817 = vld [vmem:[#allocation16 + $0x28] sm:$0xff]
    %v818 = vld [vmem:[#allocation16 + $0x30] sm:$0xff]
    %v819 = vld [vmem:[#allocation16 + $0x38] sm:$0xff]
    %v820 = vld [vmem:[#allocation16 + $0x40] sm:$0x3f]
    %v821 = vld [vmem:[#allocation16 + $0x48] sm:$0x3f]
    %v822 = vsub.f32 %v812, %v320
    %v823 = vsub.f32 %v813, %v321
    %v824 = vsub.f32 %v814, %v322
    %v825 = vsub.f32 %v815, %v323
    %v826 = vsub.f32 %v816, %v324
    %v827 = vsub.f32 %v817, %v325
    %v828 = vsub.f32 %v818, %v326
    %v829 = vsub.f32 %v819, %v327
    %v830 = vsub.f32 %v820, %v328
    %v831 = vsub.f32 %v821, %v329
    %v832 = vmul.f32 %v822, %v330
    %v833 = vmul.f32 %v823, %v331
    %v834 = vmul.f32 %v824, %v332
    %v835 = vmul.f32 %v825, %v333
    %v836 = vmul.f32 %v826, %v334
    %v837 = vmul.f32 %v827, %v335
    %v838 = vmul.f32 %v828, %v336
    %v839 = vmul.f32 %v829, %v337
    %v840 = vmul.f32 %v830, %v338
    %v841 = vmul.f32 %v831, %v339
    %v842 = vmul.f32 %v832, %v832
    %v843 = vmul.f32 %v833, %v833
    %v844 = vmul.f32 %v834, %v834
    %v845 = vmul.f32 %v835, %v835
    %v846 = vmul.f32 %v836, %v836
    %v847 = vmul.f32 %v837, %v837
    %v848 = vmul.f32 %v838, %v838
    %v849 = vmul.f32 %v839, %v839
    %v850 = vmul.f32 %v840, %v840
    %v851 = vmul.f32 %v841, %v841
    %v852 = vadd.f32 %v842, %v844
    %v853 = vadd.f32 %v852, %v846
    %v854 = vadd.f32 %v853, %v848
    %v855 = vsel %vm498, %v850, 0.0
    %v856 = vadd.f32 %v854, %v855
    %v857 = vrot.slane %v856, 4
    %v858 = vadd.f32 %v856, %v857
    %v859 = vrot.slane %v858, 2
    %v860 = vadd.f32 %v858, %v859
    %v861 = vrot.slane %v860, 1
    %v862 = vadd.f32 %v860, %v861
    %v863 = vadd.f32 %v843, %v845
    %v864 = vadd.f32 %v863, %v847
    %v865 = vadd.f32 %v864, %v849
    %v866 = vsel %vm498, %v851, 0.0
    %v867 = vadd.f32 %v865, %v866
    %v868 = vrot.slane %v867, 4
    %v869 = vadd.f32 %v867, %v868
    %v870 = vrot.slane %v869, 2
    %v871 = vadd.f32 %v869, %v870
    %v872 = vrot.slane %v871, 1
    %v873 = vadd.f32 %v871, %v872
    %v874 = vadd.f32 %v696, %v862
    %v875 = vadd.f32 %v697, %v873
    %v876 = vld [vmem:[#allocation8] sm:$0xff]
    %v877 = vld [vmem:[#allocation8 + $0x8] sm:$0xff]
    %v878 = vld [vmem:[#allocation8 + $0x10] sm:$0xff]
    %v879 = vld [vmem:[#allocation8 + $0x18] sm:$0xff]
    %v880 = vld [vmem:[#allocation8 + $0x20] sm:$0xff]
    %v881 = vld [vmem:[#allocation8 + $0x28] sm:$0xff]
    %v882 = vld [vmem:[#allocation8 + $0x30] sm:$0xff]
    %v883 = vld [vmem:[#allocation8 + $0x38] sm:$0xff]
    %v884 = vld [vmem:[#allocation8 + $0x40] sm:$0xff]
    %v885 = vld [vmem:[#allocation8 + $0x48] sm:$0xff]
    %v886 = vld [vmem:[#allocation8 + $0x50] sm:$0xff]
    %v887 = vld [vmem:[#allocation8 + $0x58] sm:$0xff]
    %v888 = vld [vmem:[#allocation8 + $0x60] sm:$0xff]
    %v889 = vld [vmem:[#allocation8 + $0x68] sm:$0xff]
    %v890 = vld [vmem:[#allocation8 + $0x70] sm:$0xff]
    %v891 = vld [vmem:[#allocation8 + $0x78] sm:$0xff]
    %v892 = vld [vmem:[#allocation8 + $0x80] sm:$0xff]
    %v893 = vld [vmem:[#allocation8 + $0x88] sm:$0xff]
    %v894 = vld [vmem:[#allocation8 + $0x90] sm:$0xf]
    %v895 = vld [vmem:[#allocation8 + $0x98] sm:$0xf]
    %v896 = vsub.f32 %v876, %v280
    %v897 = vsub.f32 %v877, %v281
    %v898 = vsub.f32 %v878, %v282
    %v899 = vsub.f32 %v879, %v283
    %v900 = vsub.f32 %v880, %v284
    %v901 = vsub.f32 %v881, %v285
    %v902 = vsub.f32 %v882, %v286
    %v903 = vsub.f32 %v883, %v287
    %v904 = vsub.f32 %v884, %v288
    %v905 = vsub.f32 %v885, %v289
    %v906 = vsub.f32 %v886, %v290
    %v907 = vsub.f32 %v887, %v291
    %v908 = vsub.f32 %v888, %v292
    %v909 = vsub.f32 %v889, %v293
    %v910 = vsub.f32 %v890, %v294
    %v911 = vsub.f32 %v891, %v295
    %v912 = vsub.f32 %v892, %v296
    %v913 = vsub.f32 %v893, %v297
    %v914 = vsub.f32 %v894, %v298
    %v915 = vsub.f32 %v895, %v299
    %v916 = vmul.f32 %v896, %v300
    %v917 = vmul.f32 %v897, %v301
    %v918 = vmul.f32 %v898, %v302
    %v919 = vmul.f32 %v899, %v303
    %v920 = vmul.f32 %v900, %v304
    %v921 = vmul.f32 %v901, %v305
    %v922 = vmul.f32 %v902, %v306
    %v923 = vmul.f32 %v903, %v307
    %v924 = vmul.f32 %v904, %v308
    %v925 = vmul.f32 %v905, %v309
    %v926 = vmul.f32 %v906, %v310
    %v927 = vmul.f32 %v907, %v311
    %v928 = vmul.f32 %v908, %v312
    %v929 = vmul.f32 %v909, %v313
    %v930 = vmul.f32 %v910, %v314
    %v931 = vmul.f32 %v911, %v315
    %v932 = vmul.f32 %v912, %v316
    %v933 = vmul.f32 %v913, %v317
    %v934 = vmul.f32 %v914, %v318
    %v935 = vmul.f32 %v915, %v319
    %v936 = vmul.f32 %v916, %v916
    %v937 = vmul.f32 %v917, %v917
    %v938 = vmul.f32 %v918, %v918
    %v939 = vmul.f32 %v919, %v919
    %v940 = vmul.f32 %v920, %v920
    %v941 = vmul.f32 %v921, %v921
    %v942 = vmul.f32 %v922, %v922
    %v943 = vmul.f32 %v923, %v923
    %v944 = vmul.f32 %v924, %v924
    %v945 = vmul.f32 %v925, %v925
    %v946 = vmul.f32 %v926, %v926
    %v947 = vmul.f32 %v927, %v927
    %v948 = vmul.f32 %v928, %v928
    %v949 = vmul.f32 %v929, %v929
    %v950 = vmul.f32 %v930, %v930
    %v951 = vmul.f32 %v931, %v931
    %v952 = vmul.f32 %v932, %v932
    %v953 = vmul.f32 %v933, %v933
    %v954 = vmul.f32 %v934, %v934
    %v955 = vmul.f32 %v935, %v935
    %v956 = vadd.f32 %v936, %v938
    %v957 = vadd.f32 %v956, %v940
    %v958 = vadd.f32 %v957, %v942
    %v959 = vadd.f32 %v958, %v944
    %v960 = vadd.f32 %v959, %v946
    %v961 = vadd.f32 %v960, %v948
    %v962 = vadd.f32 %v961, %v950
    %v963 = vadd.f32 %v962, %v952
    %v964 = vsel %vm428, %v954, 0.0
    %v965 = vadd.f32 %v963, %v964
    %v966 = vrot.slane %v965, 4
    %v967 = vadd.f32 %v965, %v966
    %v968 = vrot.slane %v967, 2
    %v969 = vadd.f32 %v967, %v968
    %v970 = vrot.slane %v969, 1
    %v971 = vadd.f32 %v969, %v970
    %v972 = vadd.f32 %v937, %v939
    %v973 = vadd.f32 %v972, %v941
    %v974 = vadd.f32 %v973, %v943
    %v975 = vadd.f32 %v974, %v945
    %v976 = vadd.f32 %v975, %v947
    %v977 = vadd.f32 %v976, %v949
    %v978 = vadd.f32 %v977, %v951
    %v979 = vadd.f32 %v978, %v953
    %v980 = vsel %vm428, %v955, 0.0
    %v981 = vadd.f32 %v979, %v980
    %v982 = vrot.slane %v981, 4
    %v983 = vadd.f32 %v981, %v982
    %v984 = vrot.slane %v983, 2
    %v985 = vadd.f32 %v983, %v984
    %v986 = vrot.slane %v985, 1
    %v987 = vadd.f32 %v985, %v986
    %v988 = vadd.f32 %v810, %v971
    %v989 = vadd.f32 %v811, %v987
    %v990 = vld [vmem:[#allocation17] sm:$0xff]
    %v991 = vld [vmem:[#allocation17 + $0x8] sm:$0xff]
    %v992 = vld [vmem:[#allocation17 + $0x10] sm:$0xff]
    %v993 = vld [vmem:[#allocation17 + $0x18] sm:$0xff]
    %v994 = vld [vmem:[#allocation17 + $0x20] sm:$0xff]
    %v995 = vld [vmem:[#allocation17 + $0x28] sm:$0xff]
    %v996 = vld [vmem:[#allocation17 + $0x30] sm:$0xff]
    %v997 = vld [vmem:[#allocation17 + $0x38] sm:$0xff]
    %v998 = vld [vmem:[#allocation17 + $0x40] sm:$0x3f]
    %v999 = vld [vmem:[#allocation17 + $0x48] sm:$0x3f]
    %v1000 = vsub.f32 %v990, %v320
    %v1001 = vsub.f32 %v991, %v321
    %v1002 = vsub.f32 %v992, %v322
    %v1003 = vsub.f32 %v993, %v323
    %v1004 = vsub.f32 %v994, %v324
    %v1005 = vsub.f32 %v995, %v325
    %v1006 = vsub.f32 %v996, %v326
    %v1007 = vsub.f32 %v997, %v327
    %v1008 = vsub.f32 %v998, %v328
    %v1009 = vsub.f32 %v999, %v329
    %v1010 = vmul.f32 %v1000, %v330
    %v1011 = vmul.f32 %v1001, %v331
    %v1012 = vmul.f32 %v1002, %v332
    %v1013 = vmul.f32 %v1003, %v333
    %v1014 = vmul.f32 %v1004, %v334
    %v1015 = vmul.f32 %v1005, %v335
    %v1016 = vmul.f32 %v1006, %v336
    %v1017 = vmul.f32 %v1007, %v337
    %v1018 = vmul.f32 %v1008, %v338
    %v1019 = vmul.f32 %v1009, %v339
    %v1020 = vmul.f32 %v1010, %v1010
    %v1021 = vmul.f32 %v1011, %v1011
    %v1022 = vmul.f32 %v1012, %v1012
    %v1023 = vmul.f32 %v1013, %v1013
    %v1024 = vmul.f32 %v1014, %v1014
    %v1025 = vmul.f32 %v1015, %v1015
    %v1026 = vmul.f32 %v1016, %v1016
    %v1027 = vmul.f32 %v1017, %v1017
    %v1028 = vmul.f32 %v1018, %v1018
    %v1029 = vmul.f32 %v1019, %v1019
    %v1030 = vadd.f32 %v1020, %v1022
    %v1031 = vadd.f32 %v1030, %v1024
    %v1032 = vadd.f32 %v1031, %v1026
    %v1033 = vsel %vm498, %v1028, 0.0
    %v1034 = vadd.f32 %v1032, %v1033
    %v1035 = vrot.slane %v1034, 4
    %v1036 = vadd.f32 %v1034, %v1035
    %v1037 = vrot.slane %v1036, 2
    %v1038 = vadd.f32 %v1036, %v1037
    %v1039 = vrot.slane %v1038, 1
    %v1040 = vadd.f32 %v1038, %v1039
    %v1041 = vadd.f32 %v1021, %v1023
    %v1042 = vadd.f32 %v1041, %v1025
    %v1043 = vadd.f32 %v1042, %v1027
    %v1044 = vsel %vm498, %v1029, 0.0
    %v1045 = vadd.f32 %v1043, %v1044
    %v1046 = vrot.slane %v1045, 4
    %v1047 = vadd.f32 %v1045, %v1046
    %v1048 = vrot.slane %v1047, 2
    %v1049 = vadd.f32 %v1047, %v1048
    %v1050 = vrot.slane %v1049, 1
    %v1051 = vadd.f32 %v1049, %v1050
    %v1052 = vadd.f32 %v874, %v1040
    %v1053 = vadd.f32 %v875, %v1051
    %v1054 = vld [vmem:[#allocation10] sm:$0xff]
    %v1055 = vld [vmem:[#allocation10 + $0x8] sm:$0xff]
    %v1056 = vld [vmem:[#allocation10 + $0x10] sm:$0xff]
    %v1057 = vld [vmem:[#allocation10 + $0x18] sm:$0xff]
    %v1058 = vld [vmem:[#allocation10 + $0x20] sm:$0xff]
    %v1059 = vld [vmem:[#allocation10 + $0x28] sm:$0xff]
    %v1060 = vld [vmem:[#allocation10 + $0x30] sm:$0xff]
    %v1061 = vld [vmem:[#allocation10 + $0x38] sm:$0xff]
    %v1062 = vld [vmem:[#allocation10 + $0x40] sm:$0xff]
    %v1063 = vld [vmem:[#allocation10 + $0x48] sm:$0xff]
    %v1064 = vld [vmem:[#allocation10 + $0x50] sm:$0xff]
    %v1065 = vld [vmem:[#allocation10 + $0x58] sm:$0xff]
    %v1066 = vld [vmem:[#allocation10 + $0x60] sm:$0xff]
    %v1067 = vld [vmem:[#allocation10 + $0x68] sm:$0xff]
    %v1068 = vld [vmem:[#allocation10 + $0x70] sm:$0xff]
    %v1069 = vld [vmem:[#allocation10 + $0x78] sm:$0xff]
    %v1070 = vld [vmem:[#allocation10 + $0x80] sm:$0xff]
    %v1071 = vld [vmem:[#allocation10 + $0x88] sm:$0xff]
    %v1072 = vld [vmem:[#allocation10 + $0x90] sm:$0xf]
    %v1073 = vld [vmem:[#allocation10 + $0x98] sm:$0xf]
    %v1074 = vsub.f32 %v1054, %v280
    %v1075 = vsub.f32 %v1055, %v281
    %v1076 = vsub.f32 %v1056, %v282
    %v1077 = vsub.f32 %v1057, %v283
    %v1078 = vsub.f32 %v1058, %v284
    %v1079 = vsub.f32 %v1059, %v285
    %v1080 = vsub.f32 %v1060, %v286
    %v1081 = vsub.f32 %v1061, %v287
    %v1082 = vsub.f32 %v1062, %v288
    %v1083 = vsub.f32 %v1063, %v289
    %v1084 = vsub.f32 %v1064, %v290
    %v1085 = vsub.f32 %v1065, %v291
    %v1086 = vsub.f32 %v1066, %v292
    %v1087 = vsub.f32 %v1067, %v293
    %v1088 = vsub.f32 %v1068, %v294
    %v1089 = vsub.f32 %v1069, %v295
    %v1090 = vsub.f32 %v1070, %v296
    %v1091 = vsub.f32 %v1071, %v297
    %v1092 = vsub.f32 %v1072, %v298
    %v1093 = vsub.f32 %v1073, %v299
    %v1094 = vmul.f32 %v1074, %v300
    %v1095 = vmul.f32 %v1075, %v301
    %v1096 = vmul.f32 %v1076, %v302
    %v1097 = vmul.f32 %v1077, %v303
    %v1098 = vmul.f32 %v1078, %v304
    %v1099 = vmul.f32 %v1079, %v305
    %v1100 = vmul.f32 %v1080, %v306
    %v1101 = vmul.f32 %v1081, %v307
    %v1102 = vmul.f32 %v1082, %v308
    %v1103 = vmul.f32 %v1083, %v309
    %v1104 = vmul.f32 %v1084, %v310
    %v1105 = vmul.f32 %v1085, %v311
    %v1106 = vmul.f32 %v1086, %v312
    %v1107 = vmul.f32 %v1087, %v313
    %v1108 = vmul.f32 %v1088, %v314
    %v1109 = vmul.f32 %v1089, %v315
    %v1110 = vmul.f32 %v1090, %v316
    %v1111 = vmul.f32 %v1091, %v317
    %v1112 = vmul.f32 %v1092, %v318
    %v1113 = vmul.f32 %v1093, %v319
    %v1114 = vmul.f32 %v1094, %v1094
    %v1115 = vmul.f32 %v1095, %v1095
    %v1116 = vmul.f32 %v1096, %v1096
    %v1117 = vmul.f32 %v1097, %v1097
    %v1118 = vmul.f32 %v1098, %v1098
    %v1119 = vmul.f32 %v1099, %v1099
    %v1120 = vmul.f32 %v1100, %v1100
    %v1121 = vmul.f32 %v1101, %v1101
    %v1122 = vmul.f32 %v1102, %v1102
    %v1123 = vmul.f32 %v1103, %v1103
    %v1124 = vmul.f32 %v1104, %v1104
    %v1125 = vmul.f32 %v1105, %v1105
    %v1126 = vmul.f32 %v1106, %v1106
    %v1127 = vmul.f32 %v1107, %v1107
    %v1128 = vmul.f32 %v1108, %v1108
    %v1129 = vmul.f32 %v1109, %v1109
    %v1130 = vmul.f32 %v1110, %v1110
    %v1131 = vmul.f32 %v1111, %v1111
    %v1132 = vmul.f32 %v1112, %v1112
    %v1133 = vmul.f32 %v1113, %v1113
    %v1134 = vadd.f32 %v1114, %v1116
    %v1135 = vadd.f32 %v1134, %v1118
    %v1136 = vadd.f32 %v1135, %v1120
    %v1137 = vadd.f32 %v1136, %v1122
    %v1138 = vadd.f32 %v1137, %v1124
    %v1139 = vadd.f32 %v1138, %v1126
    %v1140 = vadd.f32 %v1139, %v1128
    %v1141 = vadd.f32 %v1140, %v1130
    %v1142 = vsel %vm428, %v1132, 0.0
    %v1143 = vadd.f32 %v1141, %v1142
    %v1144 = vrot.slane %v1143, 4
    %v1145 = vadd.f32 %v1143, %v1144
    %v1146 = vrot.slane %v1145, 2
    %v1147 = vadd.f32 %v1145, %v1146
    %v1148 = vrot.slane %v1147, 1
    %v1149 = vadd.f32 %v1147, %v1148
    %v1150 = vadd.f32 %v1115, %v1117
    %v1151 = vadd.f32 %v1150, %v1119
    %v1152 = vadd.f32 %v1151, %v1121
    %v1153 = vadd.f32 %v1152, %v1123
    %v1154 = vadd.f32 %v1153, %v1125
    %v1155 = vadd.f32 %v1154, %v1127
    %v1156 = vadd.f32 %v1155, %v1129
    %v1157 = vadd.f32 %v1156, %v1131
    %v1158 = vsel %vm428, %v1133, 0.0
    %v1159 = vadd.f32 %v1157, %v1158
    %v1160 = vrot.slane %v1159, 4
    %v1161 = vadd.f32 %v1159, %v1160
    %v1162 = vrot.slane %v1161, 2
    %v1163 = vadd.f32 %v1161, %v1162
    %v1164 = vrot.slane %v1163, 1
    %v1165 = vadd.f32 %v1163, %v1164
    %v1166 = vadd.f32 %v988, %v1149
    %v1167 = vadd.f32 %v989, %v1165
    %v1168 = vld [vmem:[#allocation19] sm:$0xff]
    %v1169 = vld [vmem:[#allocation19 + $0x8] sm:$0xff]
    %v1170 = vld [vmem:[#allocation19 + $0x10] sm:$0xff]
    %v1171 = vld [vmem:[#allocation19 + $0x18] sm:$0xff]
    %v1172 = vld [vmem:[#allocation19 + $0x20] sm:$0xff]
    %v1173 = vld [vmem:[#allocation19 + $0x28] sm:$0xff]
    %v1174 = vld [vmem:[#allocation19 + $0x30] sm:$0xff]
    %v1175 = vld [vmem:[#allocation19 + $0x38] sm:$0xff]
    %v1176 = vld [vmem:[#allocation19 + $0x40] sm:$0x3f]
    %v1177 = vld [vmem:[#allocation19 + $0x48] sm:$0x3f]
    %v1178 = vsub.f32 %v1168, %v320
    %v1179 = vsub.f32 %v1169, %v321
    %v1180 = vsub.f32 %v1170, %v322
    %v1181 = vsub.f32 %v1171, %v323
    %v1182 = vsub.f32 %v1172, %v324
    %v1183 = vsub.f32 %v1173, %v325
    %v1184 = vsub.f32 %v1174, %v326
    %v1185 = vsub.f32 %v1175, %v327
    %v1186 = vsub.f32 %v1176, %v328
    %v1187 = vsub.f32 %v1177, %v329
    %v1188 = vmul.f32 %v1178, %v330
    %v1189 = vmul.f32 %v1179, %v331
    %v1190 = vmul.f32 %v1180, %v332
    %v1191 = vmul.f32 %v1181, %v333
    %v1192 = vmul.f32 %v1182, %v334
    %v1193 = vmul.f32 %v1183, %v335
    %v1194 = vmul.f32 %v1184, %v336
    %v1195 = vmul.f32 %v1185, %v337
    %v1196 = vmul.f32 %v1186, %v338
    %v1197 = vmul.f32 %v1187, %v339
    %v1198 = vmul.f32 %v1188, %v1188
    %v1199 = vmul.f32 %v1189, %v1189
    %v1200 = vmul.f32 %v1190, %v1190
    %v1201 = vmul.f32 %v1191, %v1191
    %v1202 = vmul.f32 %v1192, %v1192
    %v1203 = vmul.f32 %v1193, %v1193
    %v1204 = vmul.f32 %v1194, %v1194
    %v1205 = vmul.f32 %v1195, %v1195
    %v1206 = vmul.f32 %v1196, %v1196
    %v1207 = vmul.f32 %v1197, %v1197
    %v1208 = vadd.f32 %v1198, %v1200
    %v1209 = vadd.f32 %v1208, %v1202
    %v1210 = vadd.f32 %v1209, %v1204
    %v1211 = vsel %vm498, %v1206, 0.0
    %v1212 = vadd.f32 %v1210, %v1211
    %v1213 = vrot.slane %v1212, 4
    %v1214 = vadd.f32 %v1212, %v1213
    %v1215 = vrot.slane %v1214, 2
    %v1216 = vadd.f32 %v1214, %v1215
    %v1217 = vrot.slane %v1216, 1
    %v1218 = vadd.f32 %v1216, %v1217
    %v1219 = vadd.f32 %v1199, %v1201
    %v1220 = vadd.f32 %v1219, %v1203
    %v1221 = vadd.f32 %v1220, %v1205
    %v1222 = vsel %vm498, %v1207, 0.0
    %v1223 = vadd.f32 %v1221, %v1222
    %v1224 = vrot.slane %v1223, 4
    %v1225 = vadd.f32 %v1223, %v1224
    %v1226 = vrot.slane %v1225, 2
    %v1227 = vadd.f32 %v1225, %v1226
    %v1228 = vrot.slane %v1227, 1
    %v1229 = vadd.f32 %v1227, %v1228
    %v1230 = vadd.f32 %v1052, %v1218
    %v1231 = vadd.f32 %v1053, %v1229
    %v1232 = vld [vmem:[#allocation11] sm:$0xff]
    %v1233 = vld [vmem:[#allocation11 + $0x8] sm:$0xff]
    %v1234 = vld [vmem:[#allocation11 + $0x10] sm:$0xff]
    %v1235 = vld [vmem:[#allocation11 + $0x18] sm:$0xff]
    %v1236 = vld [vmem:[#allocation11 + $0x20] sm:$0xff]
    %v1237 = vld [vmem:[#allocation11 + $0x28] sm:$0xff]
    %v1238 = vld [vmem:[#allocation11 + $0x30] sm:$0xff]
    %v1239 = vld [vmem:[#allocation11 + $0x38] sm:$0xff]
    %v1240 = vld [vmem:[#allocation11 + $0x40] sm:$0xff]
    %v1241 = vld [vmem:[#allocation11 + $0x48] sm:$0xff]
    %v1242 = vld [vmem:[#allocation11 + $0x50] sm:$0xff]
    %v1243 = vld [vmem:[#allocation11 + $0x58] sm:$0xff]
    %v1244 = vld [vmem:[#allocation11 + $0x60] sm:$0xff]
    %v1245 = vld [vmem:[#allocation11 + $0x68] sm:$0xff]
    %v1246 = vld [vmem:[#allocation11 + $0x70] sm:$0xff]
    %v1247 = vld [vmem:[#allocation11 + $0x78] sm:$0xff]
    %v1248 = vld [vmem:[#allocation11 + $0x80] sm:$0xff]
    %v1249 = vld [vmem:[#allocation11 + $0x88] sm:$0xff]
    %v1250 = vld [vmem:[#allocation11 + $0x90] sm:$0xf]
    %v1251 = vld [vmem:[#allocation11 + $0x98] sm:$0xf]
    %v1252 = vsub.f32 %v1232, %v280
    %v1253 = vsub.f32 %v1233, %v281
    %v1254 = vsub.f32 %v1234, %v282
    %v1255 = vsub.f32 %v1235, %v283
    %v1256 = vsub.f32 %v1236, %v284
    %v1257 = vsub.f32 %v1237, %v285
    %v1258 = vsub.f32 %v1238, %v286
    %v1259 = vsub.f32 %v1239, %v287
    %v1260 = vsub.f32 %v1240, %v288
    %v1261 = vsub.f32 %v1241, %v289
    %v1262 = vsub.f32 %v1242, %v290
    %v1263 = vsub.f32 %v1243, %v291
    %v1264 = vsub.f32 %v1244, %v292
    %v1265 = vsub.f32 %v1245, %v293
    %v1266 = vsub.f32 %v1246, %v294
    %v1267 = vsub.f32 %v1247, %v295
    %v1268 = vsub.f32 %v1248, %v296
    %v1269 = vsub.f32 %v1249, %v297
    %v1270 = vsub.f32 %v1250, %v298
    %v1271 = vsub.f32 %v1251, %v299
    %v1272 = vmul.f32 %v1252, %v300
    %v1273 = vmul.f32 %v1253, %v301
    %v1274 = vmul.f32 %v1254, %v302
    %v1275 = vmul.f32 %v1255, %v303
    %v1276 = vmul.f32 %v1256, %v304
    %v1277 = vmul.f32 %v1257, %v305
    %v1278 = vmul.f32 %v1258, %v306
    %v1279 = vmul.f32 %v1259, %v307
    %v1280 = vmul.f32 %v1260, %v308
    %v1281 = vmul.f32 %v1261, %v309
    %v1282 = vmul.f32 %v1262, %v310
    %v1283 = vmul.f32 %v1263, %v311
    %v1284 = vmul.f32 %v1264, %v312
    %v1285 = vmul.f32 %v1265, %v313
    %v1286 = vmul.f32 %v1266, %v314
    %v1287 = vmul.f32 %v1267, %v315
    %v1288 = vmul.f32 %v1268, %v316
    %v1289 = vmul.f32 %v1269, %v317
    %v1290 = vmul.f32 %v1270, %v318
    %v1291 = vmul.f32 %v1271, %v319
    %v1292 = vmul.f32 %v1272, %v1272
    %v1293 = vmul.f32 %v1273, %v1273
    %v1294 = vmul.f32 %v1274, %v1274
    %v1295 = vmul.f32 %v1275, %v1275
    %v1296 = vmul.f32 %v1276, %v1276
    %v1297 = vmul.f32 %v1277, %v1277
    %v1298 = vmul.f32 %v1278, %v1278
    %v1299 = vmul.f32 %v1279, %v1279
    %v1300 = vmul.f32 %v1280, %v1280
    %v1301 = vmul.f32 %v1281, %v1281
    %v1302 = vmul.f32 %v1282, %v1282
    %v1303 = vmul.f32 %v1283, %v1283
    %v1304 = vmul.f32 %v1284, %v1284
    %v1305 = vmul.f32 %v1285, %v1285
    %v1306 = vmul.f32 %v1286, %v1286
    %v1307 = vmul.f32 %v1287, %v1287
    %v1308 = vmul.f32 %v1288, %v1288
    %v1309 = vmul.f32 %v1289, %v1289
    %v1310 = vmul.f32 %v1290, %v1290
    %v1311 = vmul.f32 %v1291, %v1291
    %v1312 = vadd.f32 %v1292, %v1294
    %v1313 = vadd.f32 %v1312, %v1296
    %v1314 = vadd.f32 %v1313, %v1298
    %v1315 = vadd.f32 %v1314, %v1300
    %v1316 = vadd.f32 %v1315, %v1302
    %v1317 = vadd.f32 %v1316, %v1304
    %v1318 = vadd.f32 %v1317, %v1306
    %v1319 = vadd.f32 %v1318, %v1308
    %v1320 = vsel %vm428, %v1310, 0.0
    %v1321 = vadd.f32 %v1319, %v1320
    %v1322 = vrot.slane %v1321, 4
    %v1323 = vadd.f32 %v1321, %v1322
    %v1324 = vrot.slane %v1323, 2
    %v1325 = vadd.f32 %v1323, %v1324
    %v1326 = vrot.slane %v1325, 1
    %v1327 = vadd.f32 %v1325, %v1326
    %v1328 = vadd.f32 %v1293, %v1295
    %v1329 = vadd.f32 %v1328, %v1297
    %v1330 = vadd.f32 %v1329, %v1299
    %v1331 = vadd.f32 %v1330, %v1301
    %v1332 = vadd.f32 %v1331, %v1303
    %v1333 = vadd.f32 %v1332, %v1305
    %v1334 = vadd.f32 %v1333, %v1307
    %v1335 = vadd.f32 %v1334, %v1309
    %v1336 = vsel %vm428, %v1311, 0.0
    %v1337 = vadd.f32 %v1335, %v1336
    %v1338 = vrot.slane %v1337, 4
    %v1339 = vadd.f32 %v1337, %v1338
    %v1340 = vrot.slane %v1339, 2
    %v1341 = vadd.f32 %v1339, %v1340
    %v1342 = vrot.slane %v1341, 1
    %v1343 = vadd.f32 %v1341, %v1342
    %v1344 = vadd.f32 %v1166, %v1327
    %v1345 = vadd.f32 %v1167, %v1343
    %v1346 = vld [vmem:[#allocation20] sm:$0xff]
    %v1347 = vld [vmem:[#allocation20 + $0x8] sm:$0xff]
    %v1348 = vld [vmem:[#allocation20 + $0x10] sm:$0xff]
    %v1349 = vld [vmem:[#allocation20 + $0x18] sm:$0xff]
    %v1350 = vld [vmem:[#allocation20 + $0x20] sm:$0xff]
    %v1351 = vld [vmem:[#allocation20 + $0x28] sm:$0xff]
    %v1352 = vld [vmem:[#allocation20 + $0x30] sm:$0xff]
    %v1353 = vld [vmem:[#allocation20 + $0x38] sm:$0xff]
    %v1354 = vld [vmem:[#allocation20 + $0x40] sm:$0x3f]
    %v1355 = vld [vmem:[#allocation20 + $0x48] sm:$0x3f]
    %v1356 = vsub.f32 %v1346, %v320
    %v1357 = vsub.f32 %v1347, %v321
    %v1358 = vsub.f32 %v1348, %v322
    %v1359 = vsub.f32 %v1349, %v323
    %v1360 = vsub.f32 %v1350, %v324
    %v1361 = vsub.f32 %v1351, %v325
    %v1362 = vsub.f32 %v1352, %v326
    %v1363 = vsub.f32 %v1353, %v327
    %v1364 = vsub.f32 %v1354, %v328
    %v1365 = vsub.f32 %v1355, %v329
    %v1366 = vmul.f32 %v1356, %v330
    %v1367 = vmul.f32 %v1357, %v331
    %v1368 = vmul.f32 %v1358, %v332
    %v1369 = vmul.f32 %v1359, %v333
    %v1370 = vmul.f32 %v1360, %v334
    %v1371 = vmul.f32 %v1361, %v335
    %v1372 = vmul.f32 %v1362, %v336
    %v1373 = vmul.f32 %v1363, %v337
    %v1374 = vmul.f32 %v1364, %v338
    %v1375 = vmul.f32 %v1365, %v339
    %v1376 = vmul.f32 %v1366, %v1366
    %v1377 = vmul.f32 %v1367, %v1367
    %v1378 = vmul.f32 %v1368, %v1368
    %v1379 = vmul.f32 %v1369, %v1369
    %v1380 = vmul.f32 %v1370, %v1370
    %v1381 = vmul.f32 %v1371, %v1371
    %v1382 = vmul.f32 %v1372, %v1372
    %v1383 = vmul.f32 %v1373, %v1373
    %v1384 = vmul.f32 %v1374, %v1374
    %v1385 = vmul.f32 %v1375, %v1375
    %v1386 = vadd.f32 %v1376, %v1378
    %v1387 = vadd.f32 %v1386, %v1380
    %v1388 = vadd.f32 %v1387, %v1382
    %v1389 = vsel %vm498, %v1384, 0.0
    %v1390 = vadd.f32 %v1388, %v1389
    %v1391 = vrot.slane %v1390, 4
    %v1392 = vadd.f32 %v1390, %v1391
    %v1393 = vrot.slane %v1392, 2
    %v1394 = vadd.f32 %v1392, %v1393
    %v1395 = vrot.slane %v1394, 1
    %v1396 = vadd.f32 %v1394, %v1395
    %v1397 = vadd.f32 %v1377, %v1379
    %v1398 = vadd.f32 %v1397, %v1381
    %v1399 = vadd.f32 %v1398, %v1383
    %v1400 = vsel %vm498, %v1385, 0.0
    %v1401 = vadd.f32 %v1399, %v1400
    %v1402 = vrot.slane %v1401, 4
    %v1403 = vadd.f32 %v1401, %v1402
    %v1404 = vrot.slane %v1403, 2
    %v1405 = vadd.f32 %v1403, %v1404
    %v1406 = vrot.slane %v1405, 1
    %v1407 = vadd.f32 %v1405, %v1406
    %v1408 = vadd.f32 %v1230, %v1396
    %v1409 = vadd.f32 %v1231, %v1407
    %v1410 = vsel %vm278, %v1344, 0.0
    %v1411 = vsel %vm279, %v1345, 0.0
    %v1412 = vsel %vm278, %v1408, 0.0
    %v1413 = vsel %vm279, %v1409, 0.0
    %vm1414 = vcmask 1040384
    %v1415 = vsel %vm1414, %v1410, 0.0
    %v1416 = vsel %vm1414, %v1411, 0.0
    %v1417 = vadd.f32 %v1415, %v1416
    %1418 = vadd.xlane.f32.xlu0 %v1417
    %v1419 = vpop.xlane.xlu0 %1418
    %v1420 = vrot.slane %v1419, 4
    %v1421 = vadd.f32 %v1419, %v1420
    %v1422 = vrot.slane %v1421, 2
    %v1423 = vadd.f32 %v1421, %v1422
    %v1424 = vrot.slane %v1423, 1
    %v1425 = vadd.f32 %v1423, %v1424
    %s1426 = vtos %v1425
    %s1427 = smul.f32 %s1426, 5.1398027e-05
    %v1428 = vsel %vm1414, %v1412, 0.0
    %v1429 = vsel %vm1414, %v1413, 0.0
    %v1430 = vadd.f32 %v1428, %v1429
    %1431 = vadd.xlane.f32.xlu0 %v1430
    %v1432 = vpop.xlane.xlu0 %1431
    %v1433 = vrot.slane %v1432, 4
    %v1434 = vadd.f32 %v1432, %v1433
    %v1435 = vrot.slane %v1434, 2
    %v1436 = vadd.f32 %v1434, %v1435
    %v1437 = vrot.slane %v1436, 1
    %v1438 = vadd.f32 %v1436, %v1437
    %s1439 = vtos %v1438
    %s1440 = smul.f32 %s1439, 0.00010279605
    %s1441 = sadd.f32 %s1427, %s1440
    %v1442 = vstv %s1441
    %1443 = vst [vmem:[#allocation28] sm:$0xff] %v1442
    // Predicated region
    $region130: #{tpu_custom_call.1} parent=1 // pred_check
      _
    $region131: #{tpu_custom_call.1} parent=1 // pred_check_branch
      %1445 = sbr.rel (0) target = $region133
    $region132: #{tpu_custom_call.1} parent=1 // pred_region
      %s1447 = ssub.s32 128, 128
      %1448 = vsyncadd [#allocation4], %s1447
      %s1450 = sshll.u32 [#allocation28], 4
      %s1451 = int_to_ptr.vmem [resolvable:$true] %s1450
      %1453 = dma.vmem_to_hbm [thread:$0]  %s1451, 128, %s16, [#allocation4]
    $region133: #{tpu_custom_call.1} parent=1 // pred_fallthru
      _
    // Predicated region
    $region134: #{tpu_custom_call.1} parent=1 // pred_check
      _
    $region135: #{tpu_custom_call.1} parent=1 // pred_check_branch
      %1455 = sbr.rel (0) target = $region137
    $region136: #{tpu_custom_call.1} parent=1 // pred_region
      %1456 = dma.done [#allocation4], 128
    $region137: #{tpu_custom_call.1} parent=1 // pred_fallthru
      _
    %1457 = vsyncpa [#allocation3], 1
    %1458 = vsyncpa [#allocation6], 1
    %1459 = vsyncpa [#allocation9], 1
    %1460 = vsyncpa [#allocation12], 1
    %1461 = vsyncpa [#allocation15], 1
    %1462 = vsyncpa [#allocation18], 1
    %1463 = vsyncpa [#allocation21], 1
    %1464 = vsyncpa [#allocation24], 1
    %1465 = vsyncpa [#allocation27], 1
    %1466 = vsyncpa [#allocation4], 1

</llo_original>
